<compile_context>
chip_gen: v6e
topology: v6e:2x2x1
jax: 0.10.0
libtpu: 0.0.40
codegen_flags: <defaults>
</compile_context>

<pallas_src>
import math

import numpy as np

import jax
import jax.numpy as jnp
from jax import lax
from jax.experimental import pallas as pl
from jax.experimental.pallas import tpu as pltpu

_BN_EPS = 1e-5
_TAPS = tuple((dy, dx) for dy in range(3) for dx in range(3))


# ----------------------------- small helpers --------------------------------

def _round_up(n, m):
    return (n + m - 1) // m * m


def _hsigmoid(x):
    # Hsigmoid as defined in the module: relu6(x + 3) / 3
    return jnp.clip(x + 3.0, 0.0, 6.0) / 3.0


def _bn_fold(gamma, beta, mean, var):
    """Inference BatchNorm -> per-channel (scale, shift)."""
    s = gamma / jnp.sqrt(var + _BN_EPS)
    return s, beta - mean * s


def _fold_w3x3(w, cin_pad):
    """(Cout, Cin, 3, 3) torch conv weight -> (Cout, 9*cin_pad) matmul weight.

    K columns are ordered tap-major / channel-minor to match _gather_taps, and
    zero-padded channels get zero columns."""
    cout, cin = w.shape[:2]
    wt = jnp.transpose(w, (0, 2, 3, 1))                       # (Cout, 3, 3, Cin)
    wt = jnp.pad(wt, ((0, 0), (0, 0), (0, 0), (0, cin_pad - cin)))
    return wt.reshape(cout, 9 * cin_pad)


def _tap_masks(H, W):
    """(9, H*W) float mask: 1 where the shifted tap stays inside the image."""
    ii, jj = np.divmod(np.arange(H * W), W)
    m = np.zeros((9, H * W), np.float32)
    for t, (dy, dx) in enumerate(_TAPS):
        ok = ((ii + dy - 1 >= 0) & (ii + dy - 1 < H)
              & (jj + dx - 1 >= 0) & (jj + dx - 1 < W))
        m[t] = ok.astype(np.float32)
    return jnp.asarray(m)


def _gather_taps(x, m_ref, W, L):
    """x: (Cp, L) flattened image -> (9*Cp, L) zero-padded 3x3 patch slab.

    Each tap is a static lane rotation of the flattened image followed by a
    boundary mask (equivalent to im2col of the stride-1 / pad-1 3x3 conv), but
    built in vregs instead of being DMA'd from HBM at 9x the input size."""
    pieces = []
    for t, (dy, dx) in enumerate(_TAPS):
        s = (dy - 1) * W + (dx - 1)          # flat source offset of this tap
        if s == 0:
            pieces.append(x)                 # center tap: no shift, no mask
        else:
            xt = pltpu.roll(x, shift=(-s) % L, axis=1)   # xt[l] = x[(l+s) mod L]
            pieces.append(xt * m_ref[t:t + 1, :])
    return jnp.concatenate(pieces, axis=0)


# ------------------------------ Pallas kernels -------------------------------

def _make_stage1_kernel(H, W):
    L = H * W

    def kernel(x_ref, m_ref, w_ref, b_ref, a_ref, pool_ref):
        """a = relu(W @ taps(x) + b);  pool = mean_L(a).  BN folded into W, b."""
        slab = _gather_taps(x_ref[0], m_ref, W, L)            # (9*Cin_p, L)
        a = jnp.dot(w_ref[...], slab, preferred_element_type=jnp.float32)
        a = jnp.maximum(a + b_ref[...], 0.0)
        a_ref[0] = a.astype(a_ref.dtype)
        pool_ref[0] = jnp.mean(a, axis=1, keepdims=True).astype(pool_ref.dtype)

    return kernel


def _make_stage2_kernel(H, W):
    L = H * W

    def kernel(a_ref, m_ref, phi_ref, scale_ref, wc_ref, wq_ref, bq_ref,
               s2_ref, t2_ref, wp_ref, s3_ref, t3_ref, o_ref):
        """Fused conv_dy body + final BN + ReLU for one image (lanes = H*W)."""
        a = a_ref[0]                                          # (C_p, L)
        slab = _gather_taps(a, m_ref, W, L)                   # (9*C_p, L)

        # r = scale * conv3x3(a)
        r = scale_ref[0] * jnp.dot(wc_ref[...], slab,
                                   preferred_element_type=jnp.float32)

        # q = bn1(q_conv1x1(a))          (bn1 folded into wq / bq)
        q = jnp.dot(wq_ref[...], a, preferred_element_type=jnp.float32) + bq_ref[...]

        # mid = bn2(phi @ q) + q
        z = jnp.dot(phi_ref[0], q, preferred_element_type=jnp.float32)
        mid = s2_ref[...] * z + t2_ref[...] + q

        # out = relu(bn3(p_conv1x1(mid) + r))
        out = jnp.dot(wp_ref[...], mid, preferred_element_type=jnp.float32) + r
        o_ref[0] = jnp.maximum(s3_ref[...] * out + t3_ref[...], 0.0).astype(o_ref.dtype)

    return kernel


# ------------------------------- forward pass --------------------------------

def conv_block_forward(x, p):
    """conv_block forward: x (B, ch_in, H, W) -> (B, ch_out, H, W)."""
    B, Cin, H, W = x.shape
    L = H * W
    C = p["conv1_w"].shape[0]          # ch_out
    dim = p["wq"].shape[0]             # int(sqrt(ch_out))

    # TODO(synk): BatchNorm layers use inference-mode running statistics
    # (training-mode batch-stat computation/update is not implemented).

    mask = _tap_masks(H, W)            # (9, L) static boundary masks

    # ---- stage 1: conv3x3 + BN + ReLU (+ global average pool for SE) --------
    Cin_p = _round_up(Cin, 8)
    x_flat = jnp.pad(x, ((0, 0), (0, Cin_p - Cin), (0, 0), (0, 0))).reshape(
        B, Cin_p, L)

    sA, tA = _bn_fold(p["bnA_g"], p["bnA_b"], p["bnA_m"], p["bnA_v"])
    w1f = sA[:, None] * _fold_w3x3(p["conv1_w"], Cin_p)       # (C, 9*Cin_p)
    b1f = (sA * p["conv1_b"] + tA)[:, None]                   # (C, 1)

    flops1 = int(2 * B * C * 9 * Cin_p * L + 2 * B * C * L)
    bytes1 = int(4 * (x_flat.size + mask.size + w1f.size + b1f.size
                      + B * C * L + B * C))
    a1, pooled = pl.pallas_call(
        _make_stage1_kernel(H, W),
        out_shape=(jax.ShapeDtypeStruct((B, C, L), x.dtype),
                   jax.ShapeDtypeStruct((B, C, 1), x.dtype)),
        grid_spec=pltpu.PrefetchScalarGridSpec(
            num_scalar_prefetch=0,
            grid=(B,),
            in_specs=[
                pl.BlockSpec((1, Cin_p, L), lambda b: (b, 0, 0)),   # x (flat)
                pl.BlockSpec((9, L), lambda b: (0, 0)),             # tap masks
                pl.BlockSpec((C, 9 * Cin_p), lambda b: (0, 0)),     # W (BN folded)
                pl.BlockSpec((C, 1), lambda b: (0, 0)),             # bias (folded)
            ],
            out_specs=[
                pl.BlockSpec((1, C, L), lambda b: (b, 0, 0)),       # a1
                pl.BlockSpec((1, C, 1), lambda b: (b, 0, 0)),       # avg pool
            ],
        ),
        compiler_params=pltpu.CompilerParams(dimension_semantics=("parallel",)),
        cost_estimate=pl.CostEstimate(flops=flops1, transcendentals=0,
                                      bytes_accessed=bytes1),
    )(x_flat, mask, w1f, b1f)

    # ---- conv_dy's tiny SE / phi / scale branch (per-image vectors) ---------
    # TODO(synk): this O(B*squeeze) Linear chain is far below any sensible
    # Pallas tile; it stays in plain JAX between the two fused kernels.
    y = pooled[:, :, 0]                                  # (B, C) == avg_pool
    y = y @ p["fc_w"].T                                  # (B, squeeze)
    y = y * _hsigmoid(y @ p["se_w"].T)                   # SEModule_small
    phi = (y @ p["phi_w"].T).reshape(B, dim, dim)
    scale = _hsigmoid(y @ p["scale_w"].T)[:, :, None]    # (B, C, 1)

    # ---- stage 2: fused conv_dy + final BN + ReLU ----------------------------
    C_p = _round_up(C, 8)
    a_in = a1 if C_p == C else jnp.pad(a1, ((0, 0), (0, C_p - C), (0, 0)))

    s1, t1 = _bn_fold(p["bn1_g"], p["bn1_b"], p["bn1_m"], p["bn1_v"])
    s2, t2 = _bn_fold(p["bn2_g"], p["bn2_b"], p["bn2_m"], p["bn2_v"])
    s3, t3 = _bn_fold(p["bnB_g"], p["bnB_b"], p["bnB_m"], p["bnB_v"])

    wc = _fold_w3x3(p["wc"], C_p)                                # (C, 9*C_p)
    wq = s1[:, None] * jnp.pad(p["wq"].reshape(dim, C),
                               ((0, 0), (0, C_p - C)))           # bn1 folded
    bq = t1[:, None]
    wp = p["wp"].reshape(C, dim)

    flops2 = int(2 * B * L * (C * 9 * C_p + dim * C_p + dim * dim + C * dim)
                 + 8 * B * C * L)
    bytes2 = int(4 * (a_in.size + mask.size + phi.size + scale.size
                      + wc.size + wq.size + wp.size + B * C * L))
    out = pl.pallas_call(
        _make_stage2_kernel(H, W),
        out_shape=jax.ShapeDtypeStruct((B, C, L), x.dtype),
        grid_spec=pltpu.PrefetchScalarGridSpec(
            num_scalar_prefetch=0,
            grid=(B,),
            in_specs=[
                pl.BlockSpec((1, C_p, L), lambda b: (b, 0, 0)),     # a1
                pl.BlockSpec((9, L), lambda b: (0, 0)),             # tap masks
                pl.BlockSpec((1, dim, dim), lambda b: (b, 0, 0)),   # phi
                pl.BlockSpec((1, C, 1), lambda b: (b, 0, 0)),       # scale
                pl.BlockSpec((C, 9 * C_p), lambda b: (0, 0)),       # Wc
                pl.BlockSpec((dim, C_p), lambda b: (0, 0)),         # Wq (bn1 folded)
                pl.BlockSpec((dim, 1), lambda b: (0, 0)),           # bq
                pl.BlockSpec((dim, 1), lambda b: (0, 0)),           # bn2 scale
                pl.BlockSpec((dim, 1), lambda b: (0, 0)),           # bn2 shift
                pl.BlockSpec((C, dim), lambda b: (0, 0)),           # Wp
                pl.BlockSpec((C, 1), lambda b: (0, 0)),             # bn3 scale
                pl.BlockSpec((C, 1), lambda b: (0, 0)),             # bn3 shift
            ],
            out_specs=pl.BlockSpec((1, C, L), lambda b: (b, 0, 0)),
        ),
        compiler_params=pltpu.CompilerParams(dimension_semantics=("parallel",)),
        cost_estimate=pl.CostEstimate(flops=flops2, transcendentals=0,
                                      bytes_accessed=bytes2),
    )(a_in, mask, phi, scale, wc, wq, bq,
      s2[:, None], t2[:, None], wp, s3[:, None], t3[:, None])

    return out.reshape(B, C, H, W)


# ------------------------- pure-JAX reference (check) -------------------------

def _conv2d(x, w, pad):
    return lax.conv_general_dilated(
        x, w, window_strides=(1, 1), padding=[(pad, pad), (pad, pad)],
        dimension_numbers=("NCHW", "OIHW", "NCHW"),
        precision=lax.Precision.HIGHEST)


def _bn(x, g, b, m, v):
    shape = (1, -1) + (1,) * (x.ndim - 2)
    s = g / jnp.sqrt(v + _BN_EPS)
    return x * s.reshape(shape) + (b - m * s).reshape(shape)


def _reference(x, p):
    B, _, H, W = x.shape
    C = p["conv1_w"].shape[0]
    dim = p["wq"].shape[0]
    # conv1 + BN + ReLU
    a = _conv2d(x, p["conv1_w"], 1) + p["conv1_b"].reshape(1, -1, 1, 1)
    a = jnp.maximum(_bn(a, p["bnA_g"], p["bnA_b"], p["bnA_m"], p["bnA_v"]), 0.0)
    # conv_dy
    r = _conv2d(a, p["wc"], 1)
    y = a.mean(axis=(2, 3))
    y = y @ p["fc_w"].T
    y = y * _hsigmoid(y @ p["se_w"].T)
    phi = (y @ p["phi_w"].T).reshape(B, dim, dim)
    scale = _hsigmoid(y @ p["scale_w"].T).reshape(B, C, 1, 1)
    r = scale * r
    q = _bn(_conv2d(a, p["wq"], 0), p["bn1_g"], p["bn1_b"], p["bn1_m"], p["bn1_v"])
    q = q.reshape(B, dim, H * W)
    z = jnp.einsum("bij,bjl->bil", phi, q, precision=lax.Precision.HIGHEST)
    z = _bn(z, p["bn2_g"], p["bn2_b"], p["bn2_m"], p["bn2_v"])
    mid = (z + q).reshape(B, dim, H, W)
    out = _conv2d(mid, p["wp"], 0) + r
    # final BN + ReLU
    return jnp.maximum(_bn(out, p["bnB_g"], p["bnB_b"], p["bnB_m"], p["bnB_v"]), 0.0)


# ------------------------------------ main ------------------------------------

if __name__ == "__main__":
    B, ch_in, ch_out, H, W = 2, 4, 16, 16, 16
    dim = int(math.sqrt(ch_out))                  # 4
    squeeze = max(ch_out, dim * dim) // 16        # 1
    assert squeeze >= 1

    key = jax.random.PRNGKey(0)
    keys = iter(jax.random.split(key, 32))
    nk = lambda: next(keys)

    def u(k, shape, bound):
        return jax.random.uniform(k, shape, jnp.float32, -bound, bound)

    def pos(k, shape):
        return jax.random.uniform(k, shape, jnp.float32, 0.5, 1.5)

    x = jax.random.normal(nk(), (B, ch_in, H, W), dtype=jnp.float32)

    params = {
        # conv1 (3x3, bias) + bnA
        "conv1_w": u(nk(), (ch_out, ch_in, 3, 3), 1.0 / math.sqrt(ch_in * 9)),
        "conv1_b": u(nk(), (ch_out,), 1.0 / math.sqrt(ch_in * 9)),
        "bnA_g": pos(nk(), (ch_out,)), "bnA_b": u(nk(), (ch_out,), 0.1),
        "bnA_m": u(nk(), (ch_out,), 0.1), "bnA_v": pos(nk(), (ch_out,)),
        # conv_dy
        "wc": u(nk(), (ch_out, ch_out, 3, 3), 1.0 / math.sqrt(ch_out * 9)),
        "wq": u(nk(), (dim, ch_out, 1, 1), 1.0 / math.sqrt(ch_out)),
        "wp": u(nk(), (ch_out, dim, 1, 1), 1.0 / math.sqrt(dim)),
        "bn1_g": pos(nk(), (dim,)), "bn1_b": u(nk(), (dim,), 0.1),
        "bn1_m": u(nk(), (dim,), 0.1), "bn1_v": pos(nk(), (dim,)),
        "bn2_g": pos(nk(), (dim,)), "bn2_b": u(nk(), (dim,), 0.1),
        "bn2_m": u(nk(), (dim,), 0.1), "bn2_v": pos(nk(), (dim,)),
        "fc_w": u(nk(), (squeeze, ch_out), 1.0 / math.sqrt(ch_out)),
        "se_w": u(nk(), (squeeze, squeeze), 1.0 / math.sqrt(squeeze)),
        "phi_w": u(nk(), (dim * dim, squeeze), 1.0 / math.sqrt(squeeze)),
        "scale_w": u(nk(), (ch_out, squeeze), 1.0 / math.sqrt(squeeze)),
        # final bnB
        "bnB_g": pos(nk(), (ch_out,)), "bnB_b": u(nk(), (ch_out,), 0.1),
        "bnB_m": u(nk(), (ch_out,), 0.1), "bnB_v": pos(nk(), (ch_out,)),
    }

    out = jax.jit(conv_block_forward)(x, params)
    out = jax.block_until_ready(out)

    ref = _reference(x, params)
    assert out.shape == (B, ch_out, H, W), out.shape
    max_err = float(jnp.max(jnp.abs(out - ref)))
    assert jnp.allclose(out, ref, atol=1e-3, rtol=1e-3), (
        f"mismatch vs reference (max abs err {max_err})")

    print("KERNEL_OK")
</pallas_src>

<mosaic_0001>
module attributes {stable_mosaic.version = 11 : i64} {
  func.func @kernel(%arg0: i32, %arg1: memref<1x8x256xf32, #tpu.memory_space<vmem>>, %arg2: memref<9x256xf32, #tpu.memory_space<vmem>>, %arg3: memref<16x72xf32, #tpu.memory_space<vmem>>, %arg4: memref<16x1xf32, #tpu.memory_space<vmem>>, %arg5: memref<1x16x256xf32, #tpu.memory_space<vmem>>, %arg6: memref<1x16x1xf32, #tpu.memory_space<vmem>>) attributes {dimension_semantics = [#tpu.dimension_semantics<parallel>], iteration_bounds = array<i64: 2>, scalar_prefetch = 0 : i64, scratch_operands = 0 : i64, tpu.core_type = #tpu.core_type<tc>, window_params = [{transform_indices = @transform_0, window_bounds = array<i64: 1, 8, 256>}, {pipeline_mode = #tpu.pipeline_mode<synchronous>, transform_indices = @transform_1, window_bounds = array<i64: 9, 256>}, {pipeline_mode = #tpu.pipeline_mode<synchronous>, transform_indices = @transform_2, window_bounds = array<i64: 16, 72>}, {pipeline_mode = #tpu.pipeline_mode<synchronous>, transform_indices = @transform_3, window_bounds = array<i64: 16, 1>}, {transform_indices = @transform_4, window_bounds = array<i64: 1, 16, 256>}, {transform_indices = @transform_5, window_bounds = array<i64: 1, 16, 1>}]} {
    %c0 = arith.constant 0 : index
    %c0_0 = arith.constant 0 : index
    %c0_1 = arith.constant 0 : index
    %0 = vector.load %arg1[%c0, %c0_0, %c0_1] : memref<1x8x256xf32, #tpu.memory_space<vmem>>, vector<1x8x256xf32>
    %1 = vector.shape_cast %0 : vector<1x8x256xf32> to vector<8x256xf32>
    %c17_i32 = arith.constant 17 : i32
    %2 = tpu.dynamic_rotate %1 by %c17_i32 dim 1 : vector<8x256xf32>, i32 -> vector<8x256xf32>
    %c0_2 = arith.constant 0 : index
    %c0_3 = arith.constant 0 : index
    %3 = vector.load %arg2[%c0_2, %c0_3] : memref<9x256xf32, #tpu.memory_space<vmem>>, vector<1x256xf32>
    %4 = vector.broadcast %3 : vector<1x256xf32> to vector<8x256xf32>
    %5 = arith.mulf %2, %4 : vector<8x256xf32>
    %c16_i32 = arith.constant 16 : i32
    %6 = tpu.dynamic_rotate %1 by %c16_i32 dim 1 : vector<8x256xf32>, i32 -> vector<8x256xf32>
    %c1 = arith.constant 1 : index
    %c0_4 = arith.constant 0 : index
    %7 = vector.load %arg2[%c1, %c0_4] : memref<9x256xf32, #tpu.memory_space<vmem>>, vector<1x256xf32>
    %8 = vector.broadcast %7 : vector<1x256xf32> to vector<8x256xf32>
    %9 = arith.mulf %6, %8 : vector<8x256xf32>
    %c15_i32 = arith.constant 15 : i32
    %10 = tpu.dynamic_rotate %1 by %c15_i32 dim 1 : vector<8x256xf32>, i32 -> vector<8x256xf32>
    %c2 = arith.constant 2 : index
    %c0_5 = arith.constant 0 : index
    %11 = vector.load %arg2[%c2, %c0_5] : memref<9x256xf32, #tpu.memory_space<vmem>>, vector<1x256xf32>
    %12 = vector.broadcast %11 : vector<1x256xf32> to vector<8x256xf32>
    %13 = arith.mulf %10, %12 : vector<8x256xf32>
    %c1_i32 = arith.constant 1 : i32
    %14 = tpu.dynamic_rotate %1 by %c1_i32 dim 1 : vector<8x256xf32>, i32 -> vector<8x256xf32>
    %c3 = arith.constant 3 : index
    %c0_6 = arith.constant 0 : index
    %15 = vector.load %arg2[%c3, %c0_6] : memref<9x256xf32, #tpu.memory_space<vmem>>, vector<1x256xf32>
    %16 = vector.broadcast %15 : vector<1x256xf32> to vector<8x256xf32>
    %17 = arith.mulf %14, %16 : vector<8x256xf32>
    %c255_i32 = arith.constant 255 : i32
    %18 = tpu.dynamic_rotate %1 by %c255_i32 dim 1 : vector<8x256xf32>, i32 -> vector<8x256xf32>
    %c5 = arith.constant 5 : index
    %c0_7 = arith.constant 0 : index
    %19 = vector.load %arg2[%c5, %c0_7] : memref<9x256xf32, #tpu.memory_space<vmem>>, vector<1x256xf32>
    %20 = vector.broadcast %19 : vector<1x256xf32> to vector<8x256xf32>
    %21 = arith.mulf %18, %20 : vector<8x256xf32>
    %c241_i32 = arith.constant 241 : i32
    %22 = tpu.dynamic_rotate %1 by %c241_i32 dim 1 : vector<8x256xf32>, i32 -> vector<8x256xf32>
    %c6 = arith.constant 6 : index
    %c0_8 = arith.constant 0 : index
    %23 = vector.load %arg2[%c6, %c0_8] : memref<9x256xf32, #tpu.memory_space<vmem>>, vector<1x256xf32>
    %24 = vector.broadcast %23 : vector<1x256xf32> to vector<8x256xf32>
    %25 = arith.mulf %22, %24 : vector<8x256xf32>
    %c240_i32 = arith.constant 240 : i32
    %26 = tpu.dynamic_rotate %1 by %c240_i32 dim 1 : vector<8x256xf32>, i32 -> vector<8x256xf32>
    %c7 = arith.constant 7 : index
    %c0_9 = arith.constant 0 : index
    %27 = vector.load %arg2[%c7, %c0_9] : memref<9x256xf32, #tpu.memory_space<vmem>>, vector<1x256xf32>
    %28 = vector.broadcast %27 : vector<1x256xf32> to vector<8x256xf32>
    %29 = arith.mulf %26, %28 : vector<8x256xf32>
    %c239_i32 = arith.constant 239 : i32
    %30 = tpu.dynamic_rotate %1 by %c239_i32 dim 1 : vector<8x256xf32>, i32 -> vector<8x256xf32>
    %c8 = arith.constant 8 : index
    %c0_10 = arith.constant 0 : index
    %31 = vector.load %arg2[%c8, %c0_10] : memref<9x256xf32, #tpu.memory_space<vmem>>, vector<1x256xf32>
    %32 = vector.broadcast %31 : vector<1x256xf32> to vector<8x256xf32>
    %33 = arith.mulf %30, %32 : vector<8x256xf32>
    %34 = tpu.concatenate %5, %9, %13, %17, %1, %21, %25, %29, %33 in 0 : vector<8x256xf32>, vector<8x256xf32>, vector<8x256xf32>, vector<8x256xf32>, vector<8x256xf32>, vector<8x256xf32>, vector<8x256xf32>, vector<8x256xf32>, vector<8x256xf32> -> vector<72x256xf32>
    %c0_11 = arith.constant 0 : index
    %c0_12 = arith.constant 0 : index
    %35 = vector.load %arg3[%c0_11, %c0_12] : memref<16x72xf32, #tpu.memory_space<vmem>>, vector<16x72xf32>
    %cst = arith.constant dense<0.000000e+00> : vector<16x256xf32>
    %36 = tpu.matmul %35, %34, %cst {dimension_numbers = #tpu.dot_dimension_numbers<[1], [0], [0], [1], [0, 0, 1, 1], [], []>} : vector<16x72xf32>, vector<72x256xf32>, vector<16x256xf32> -> vector<16x256xf32>
    %c0_13 = arith.constant 0 : index
    %c0_14 = arith.constant 0 : index
    %37 = vector.load %arg4[%c0_13, %c0_14] : memref<16x1xf32, #tpu.memory_space<vmem>>, vector<16x1xf32>
    %38 = vector.broadcast %37 : vector<16x1xf32> to vector<16x256xf32>
    %39 = arith.addf %36, %38 : vector<16x256xf32>
    %cst_15 = arith.constant 0.000000e+00 : f32
    %40 = vector.broadcast %cst_15 : f32 to vector<16x256xf32>
    %41 = arith.maximumf %39, %40 : vector<16x256xf32>
    %c0_16 = arith.constant 0 : index
    %c0_17 = arith.constant 0 : index
    %c0_18 = arith.constant 0 : index
    %42 = vector.load %arg5[%c0_16, %c0_17, %c0_18] : memref<1x16x256xf32, #tpu.memory_space<vmem>>, vector<1x16x256xf32>
    %43 = vector.shape_cast %42 : vector<1x16x256xf32> to vector<16x256xf32>
    %44 = vector.shape_cast %41 : vector<16x256xf32> to vector<1x16x256xf32>
    tpu.vector_store %arg5[%c0_16, %c0_17, %c0_18], %44 {strides = array<i32>} : memref<1x16x256xf32, #tpu.memory_space<vmem>>, vector<1x16x256xf32>,
    %cst_19 = arith.constant dense<0.000000e+00> : vector<16xf32>
    %45 = vector.multi_reduction <add>, %41, %cst_19 [1] : vector<16x256xf32> to vector<16xf32>
    %46 = vector.shape_cast %45 : vector<16xf32> to vector<16x1xf32>
    %cst_20 = arith.constant 2.560000e+02 : f32
    %47 = vector.broadcast %cst_20 : f32 to vector<16x1xf32>
    %48 = arith.divf %46, %47 : vector<16x1xf32>
    %c0_21 = arith.constant 0 : index
    %c0_22 = arith.constant 0 : index
    %c0_23 = arith.constant 0 : index
    %49 = vector.load %arg6[%c0_21, %c0_22, %c0_23] : memref<1x16x1xf32, #tpu.memory_space<vmem>>, vector<1x16x1xf32>
    %50 = vector.shape_cast %49 : vector<1x16x1xf32> to vector<16x1xf32>
    %51 = vector.shape_cast %48 : vector<16x1xf32> to vector<1x16x1xf32>
    tpu.vector_store %arg6[%c0_21, %c0_22, %c0_23], %51 {strides = array<i32>} : memref<1x16x1xf32, #tpu.memory_space<vmem>>, vector<1x16x1xf32>,
    return
  }
  func.func @transform_0(%arg0: i32) -> (i32, i32, i32) {
    %c0_i32 = arith.constant 0 : i32
    %c0_i32_0 = arith.constant 0 : i32
    %c0_i32_1 = arith.constant 0 : i32
    return %arg0, %c0_i32, %c0_i32_0 : i32, i32, i32
  }
  func.func @transform_1(%arg0: i32) -> (i32, i32) {
    %c0_i32 = arith.constant 0 : i32
    %c0_i32_0 = arith.constant 0 : i32
    %c0_i32_1 = arith.constant 0 : i32
    return %c0_i32, %c0_i32_0 : i32, i32
  }
  func.func @transform_2(%arg0: i32) -> (i32, i32) {
    %c0_i32 = arith.constant 0 : i32
    %c0_i32_0 = arith.constant 0 : i32
    %c0_i32_1 = arith.constant 0 : i32
    return %c0_i32, %c0_i32_0 : i32, i32
  }
  func.func @transform_3(%arg0: i32) -> (i32, i32) {
    %c0_i32 = arith.constant 0 : i32
    %c0_i32_0 = arith.constant 0 : i32
    %c0_i32_1 = arith.constant 0 : i32
    return %c0_i32, %c0_i32_0 : i32, i32
  }
  func.func @transform_4(%arg0: i32) -> (i32, i32, i32) {
    %c0_i32 = arith.constant 0 : i32
    %c0_i32_0 = arith.constant 0 : i32
    %c0_i32_1 = arith.constant 0 : i32
    return %arg0, %c0_i32, %c0_i32_0 : i32, i32, i32
  }
  func.func @transform_5(%arg0: i32) -> (i32, i32, i32) {
    %c0_i32 = arith.constant 0 : i32
    %c0_i32_0 = arith.constant 0 : i32
    %c0_i32_1 = arith.constant 0 : i32
    return %arg0, %c0_i32, %c0_i32_0 : i32, i32, i32
  }
}

module attributes {stable_mosaic.version = 11 : i64} {
  func.func @kernel(%arg0: i32, %arg1: memref<1x16x256xf32, #tpu.memory_space<vmem>>, %arg2: memref<9x256xf32, #tpu.memory_space<vmem>>, %arg3: memref<1x4x4xf32, #tpu.memory_space<vmem>>, %arg4: memref<1x16x1xf32, #tpu.memory_space<vmem>>, %arg5: memref<16x144xf32, #tpu.memory_space<vmem>>, %arg6: memref<4x16xf32, #tpu.memory_space<vmem>>, %arg7: memref<4x1xf32, #tpu.memory_space<vmem>>, %arg8: memref<4x1xf32, #tpu.memory_space<vmem>>, %arg9: memref<4x1xf32, #tpu.memory_space<vmem>>, %arg10: memref<16x4xf32, #tpu.memory_space<vmem>>, %arg11: memref<16x1xf32, #tpu.memory_space<vmem>>, %arg12: memref<16x1xf32, #tpu.memory_space<vmem>>, %arg13: memref<1x16x256xf32, #tpu.memory_space<vmem>>) attributes {dimension_semantics = [#tpu.dimension_semantics<parallel>], iteration_bounds = array<i64: 2>, scalar_prefetch = 0 : i64, scratch_operands = 0 : i64, tpu.core_type = #tpu.core_type<tc>, window_params = [{transform_indices = @transform_0, window_bounds = array<i64: 1, 16, 256>}, {pipeline_mode = #tpu.pipeline_mode<synchronous>, transform_indices = @transform_1, window_bounds = array<i64: 9, 256>}, {transform_indices = @transform_2, window_bounds = array<i64: 1, 4, 4>}, {transform_indices = @transform_3, window_bounds = array<i64: 1, 16, 1>}, {pipeline_mode = #tpu.pipeline_mode<synchronous>, transform_indices = @transform_4, window_bounds = array<i64: 16, 144>}, {pipeline_mode = #tpu.pipeline_mode<synchronous>, transform_indices = @transform_5, window_bounds = array<i64: 4, 16>}, {pipeline_mode = #tpu.pipeline_mode<synchronous>, transform_indices = @transform_6, window_bounds = array<i64: 4, 1>}, {pipeline_mode = #tpu.pipeline_mode<synchronous>, transform_indices = @transform_7, window_bounds = array<i64: 4, 1>}, {pipeline_mode = #tpu.pipeline_mode<synchronous>, transform_indices = @transform_8, window_bounds = array<i64: 4, 1>}, {pipeline_mode = #tpu.pipeline_mode<synchronous>, transform_indices = @transform_9, window_bounds = array<i64: 16, 4>}, {pipeline_mode = #tpu.pipeline_mode<synchronous>, transform_indices = @transform_10, window_bounds = array<i64: 16, 1>}, {pipeline_mode = #tpu.pipeline_mode<synchronous>, transform_indices = @transform_11, window_bounds = array<i64: 16, 1>}, {transform_indices = @transform_12, window_bounds = array<i64: 1, 16, 256>}]} {
    %c0 = arith.constant 0 : index
    %c0_0 = arith.constant 0 : index
    %c0_1 = arith.constant 0 : index
    %0 = vector.load %arg1[%c0, %c0_0, %c0_1] : memref<1x16x256xf32, #tpu.memory_space<vmem>>, vector<1x16x256xf32>
    %1 = vector.shape_cast %0 : vector<1x16x256xf32> to vector<16x256xf32>
    %c17_i32 = arith.constant 17 : i32
    %2 = tpu.dynamic_rotate %1 by %c17_i32 dim 1 : vector<16x256xf32>, i32 -> vector<16x256xf32>
    %c0_2 = arith.constant 0 : index
    %c0_3 = arith.constant 0 : index
    %3 = vector.load %arg2[%c0_2, %c0_3] : memref<9x256xf32, #tpu.memory_space<vmem>>, vector<1x256xf32>
    %4 = vector.broadcast %3 : vector<1x256xf32> to vector<16x256xf32>
    %5 = arith.mulf %2, %4 : vector<16x256xf32>
    %c16_i32 = arith.constant 16 : i32
    %6 = tpu.dynamic_rotate %1 by %c16_i32 dim 1 : vector<16x256xf32>, i32 -> vector<16x256xf32>
    %c1 = arith.constant 1 : index
    %c0_4 = arith.constant 0 : index
    %7 = vector.load %arg2[%c1, %c0_4] : memref<9x256xf32, #tpu.memory_space<vmem>>, vector<1x256xf32>
    %8 = vector.broadcast %7 : vector<1x256xf32> to vector<16x256xf32>
    %9 = arith.mulf %6, %8 : vector<16x256xf32>
    %c15_i32 = arith.constant 15 : i32
    %10 = tpu.dynamic_rotate %1 by %c15_i32 dim 1 : vector<16x256xf32>, i32 -> vector<16x256xf32>
    %c2 = arith.constant 2 : index
    %c0_5 = arith.constant 0 : index
    %11 = vector.load %arg2[%c2, %c0_5] : memref<9x256xf32, #tpu.memory_space<vmem>>, vector<1x256xf32>
    %12 = vector.broadcast %11 : vector<1x256xf32> to vector<16x256xf32>
    %13 = arith.mulf %10, %12 : vector<16x256xf32>
    %c1_i32 = arith.constant 1 : i32
    %14 = tpu.dynamic_rotate %1 by %c1_i32 dim 1 : vector<16x256xf32>, i32 -> vector<16x256xf32>
    %c3 = arith.constant 3 : index
    %c0_6 = arith.constant 0 : index
    %15 = vector.load %arg2[%c3, %c0_6] : memref<9x256xf32, #tpu.memory_space<vmem>>, vector<1x256xf32>
    %16 = vector.broadcast %15 : vector<1x256xf32> to vector<16x256xf32>
    %17 = arith.mulf %14, %16 : vector<16x256xf32>
    %c255_i32 = arith.constant 255 : i32
    %18 = tpu.dynamic_rotate %1 by %c255_i32 dim 1 : vector<16x256xf32>, i32 -> vector<16x256xf32>
    %c5 = arith.constant 5 : index
    %c0_7 = arith.constant 0 : index
    %19 = vector.load %arg2[%c5, %c0_7] : memref<9x256xf32, #tpu.memory_space<vmem>>, vector<1x256xf32>
    %20 = vector.broadcast %19 : vector<1x256xf32> to vector<16x256xf32>
    %21 = arith.mulf %18, %20 : vector<16x256xf32>
    %c241_i32 = arith.constant 241 : i32
    %22 = tpu.dynamic_rotate %1 by %c241_i32 dim 1 : vector<16x256xf32>, i32 -> vector<16x256xf32>
    %c6 = arith.constant 6 : index
    %c0_8 = arith.constant 0 : index
    %23 = vector.load %arg2[%c6, %c0_8] : memref<9x256xf32, #tpu.memory_space<vmem>>, vector<1x256xf32>
    %24 = vector.broadcast %23 : vector<1x256xf32> to vector<16x256xf32>
    %25 = arith.mulf %22, %24 : vector<16x256xf32>
    %c240_i32 = arith.constant 240 : i32
    %26 = tpu.dynamic_rotate %1 by %c240_i32 dim 1 : vector<16x256xf32>, i32 -> vector<16x256xf32>
    %c7 = arith.constant 7 : index
    %c0_9 = arith.constant 0 : index
    %27 = vector.load %arg2[%c7, %c0_9] : memref<9x256xf32, #tpu.memory_space<vmem>>, vector<1x256xf32>
    %28 = vector.broadcast %27 : vector<1x256xf32> to vector<16x256xf32>
    %29 = arith.mulf %26, %28 : vector<16x256xf32>
    %c239_i32 = arith.constant 239 : i32
    %30 = tpu.dynamic_rotate %1 by %c239_i32 dim 1 : vector<16x256xf32>, i32 -> vector<16x256xf32>
    %c8 = arith.constant 8 : index
    %c0_10 = arith.constant 0 : index
    %31 = vector.load %arg2[%c8, %c0_10] : memref<9x256xf32, #tpu.memory_space<vmem>>, vector<1x256xf32>
    %32 = vector.broadcast %31 : vector<1x256xf32> to vector<16x256xf32>
    %33 = arith.mulf %30, %32 : vector<16x256xf32>
    %34 = tpu.concatenate %5, %9, %13, %17, %1, %21, %25, %29, %33 in 0 : vector<16x256xf32>, vector<16x256xf32>, vector<16x256xf32>, vector<16x256xf32>, vector<16x256xf32>, vector<16x256xf32>, vector<16x256xf32>, vector<16x256xf32>, vector<16x256xf32> -> vector<144x256xf32>
    %c0_11 = arith.constant 0 : index
    %c0_12 = arith.constant 0 : index
    %c0_13 = arith.constant 0 : index
    %35 = vector.load %arg4[%c0_11, %c0_12, %c0_13] : memref<1x16x1xf32, #tpu.memory_space<vmem>>, vector<1x16x1xf32>
    %36 = vector.shape_cast %35 : vector<1x16x1xf32> to vector<16x1xf32>
    %c0_14 = arith.constant 0 : index
    %c0_15 = arith.constant 0 : index
    %37 = vector.load %arg5[%c0_14, %c0_15] : memref<16x144xf32, #tpu.memory_space<vmem>>, vector<16x144xf32>
    %cst = arith.constant dense<0.000000e+00> : vector<16x256xf32>
    %38 = tpu.matmul %37, %34, %cst {dimension_numbers = #tpu.dot_dimension_numbers<[1], [0], [0], [1], [0, 0, 1, 1], [], []>} : vector<16x144xf32>, vector<144x256xf32>, vector<16x256xf32> -> vector<16x256xf32>
    %39 = vector.broadcast %36 : vector<16x1xf32> to vector<16x256xf32>
    %40 = arith.mulf %39, %38 : vector<16x256xf32>
    %c0_16 = arith.constant 0 : index
    %c0_17 = arith.constant 0 : index
    %41 = vector.load %arg6[%c0_16, %c0_17] : memref<4x16xf32, #tpu.memory_space<vmem>>, vector<4x16xf32>
    %cst_18 = arith.constant dense<0.000000e+00> : vector<4x256xf32>
    %42 = tpu.matmul %41, %1, %cst_18 {dimension_numbers = #tpu.dot_dimension_numbers<[1], [0], [0], [1], [0, 0, 1, 1], [], []>} : vector<4x16xf32>, vector<16x256xf32>, vector<4x256xf32> -> vector<4x256xf32>
    %c0_19 = arith.constant 0 : index
    %c0_20 = arith.constant 0 : index
    %43 = vector.load %arg7[%c0_19, %c0_20] : memref<4x1xf32, #tpu.memory_space<vmem>>, vector<4x1xf32>
    %44 = vector.broadcast %43 : vector<4x1xf32> to vector<4x256xf32>
    %45 = arith.addf %42, %44 : vector<4x256xf32>
    %c0_21 = arith.constant 0 : index
    %c0_22 = arith.constant 0 : index
    %c0_23 = arith.constant 0 : index
    %46 = vector.load %arg3[%c0_21, %c0_22, %c0_23] : memref<1x4x4xf32, #tpu.memory_space<vmem>>, vector<1x4x4xf32>
    %47 = vector.shape_cast %46 : vector<1x4x4xf32> to vector<4x4xf32>
    %cst_24 = arith.constant dense<0.000000e+00> : vector<4x256xf32>
    %48 = tpu.matmul %47, %45, %cst_24 {dimension_numbers = #tpu.dot_dimension_numbers<[1], [0], [0], [1], [0, 0, 1, 1], [], []>} : vector<4x4xf32>, vector<4x256xf32>, vector<4x256xf32> -> vector<4x256xf32>
    %c0_25 = arith.constant 0 : index
    %c0_26 = arith.constant 0 : index
    %49 = vector.load %arg8[%c0_25, %c0_26] : memref<4x1xf32, #tpu.memory_space<vmem>>, vector<4x1xf32>
    %50 = vector.broadcast %49 : vector<4x1xf32> to vector<4x256xf32>
    %51 = arith.mulf %50, %48 : vector<4x256xf32>
    %c0_27 = arith.constant 0 : index
    %c0_28 = arith.constant 0 : index
    %52 = vector.load %arg9[%c0_27, %c0_28] : memref<4x1xf32, #tpu.memory_space<vmem>>, vector<4x1xf32>
    %53 = vector.broadcast %52 : vector<4x1xf32> to vector<4x256xf32>
    %54 = arith.addf %51, %53 : vector<4x256xf32>
    %55 = arith.addf %54, %45 : vector<4x256xf32>
    %c0_29 = arith.constant 0 : index
    %c0_30 = arith.constant 0 : index
    %56 = vector.load %arg10[%c0_29, %c0_30] : memref<16x4xf32, #tpu.memory_space<vmem>>, vector<16x4xf32>
    %cst_31 = arith.constant dense<0.000000e+00> : vector<16x256xf32>
    %57 = tpu.matmul %56, %55, %cst_31 {dimension_numbers = #tpu.dot_dimension_numbers<[1], [0], [0], [1], [0, 0, 1, 1], [], []>} : vector<16x4xf32>, vector<4x256xf32>, vector<16x256xf32> -> vector<16x256xf32>
    %58 = arith.addf %57, %40 : vector<16x256xf32>
    %c0_32 = arith.constant 0 : index
    %c0_33 = arith.constant 0 : index
    %59 = vector.load %arg11[%c0_32, %c0_33] : memref<16x1xf32, #tpu.memory_space<vmem>>, vector<16x1xf32>
    %60 = vector.broadcast %59 : vector<16x1xf32> to vector<16x256xf32>
    %61 = arith.mulf %60, %58 : vector<16x256xf32>
    %c0_34 = arith.constant 0 : index
    %c0_35 = arith.constant 0 : index
    %62 = vector.load %arg12[%c0_34, %c0_35] : memref<16x1xf32, #tpu.memory_space<vmem>>, vector<16x1xf32>
    %63 = vector.broadcast %62 : vector<16x1xf32> to vector<16x256xf32>
    %64 = arith.addf %61, %63 : vector<16x256xf32>
    %cst_36 = arith.constant 0.000000e+00 : f32
    %65 = vector.broadcast %cst_36 : f32 to vector<16x256xf32>
    %66 = arith.maximumf %64, %65 : vector<16x256xf32>
    %c0_37 = arith.constant 0 : index
    %c0_38 = arith.constant 0 : index
    %c0_39 = arith.constant 0 : index
    %67 = vector.load %arg13[%c0_37, %c0_38, %c0_39] : memref<1x16x256xf32, #tpu.memory_space<vmem>>, vector<1x16x256xf32>
    %68 = vector.shape_cast %67 : vector<1x16x256xf32> to vector<16x256xf32>
    %69 = vector.shape_cast %66 : vector<16x256xf32> to vector<1x16x256xf32>
    tpu.vector_store %arg13[%c0_37, %c0_38, %c0_39], %69 {strides = array<i32>} : memref<1x16x256xf32, #tpu.memory_space<vmem>>, vector<1x16x256xf32>,
    return
  }
  func.func @transform_0(%arg0: i32) -> (i32, i32, i32) {
    %c0_i32 = arith.constant 0 : i32
    %c0_i32_0 = arith.constant 0 : i32
    %c0_i32_1 = arith.constant 0 : i32
    return %arg0, %c0_i32, %c0_i32_0 : i32, i32, i32
  }
  func.func @transform_1(%arg0: i32) -> (i32, i32) {
    %c0_i32 = arith.constant 0 : i32
    %c0_i32_0 = arith.constant 0 : i32
    %c0_i32_1 = arith.constant 0 : i32
    return %c0_i32, %c0_i32_0 : i32, i32
  }
  func.func @transform_2(%arg0: i32) -> (i32, i32, i32) {
    %c0_i32 = arith.constant 0 : i32
    %c0_i32_0 = arith.constant 0 : i32
    %c0_i32_1 = arith.constant 0 : i32
    return %arg0, %c0_i32, %c0_i32_0 : i32, i32, i32
  }
  func.func @transform_3(%arg0: i32) -> (i32, i32, i32) {
    %c0_i32 = arith.constant 0 : i32
    %c0_i32_0 = arith.constant 0 : i32
    %c0_i32_1 = arith.constant 0 : i32
    return %arg0, %c0_i32, %c0_i32_0 : i32, i32, i32
  }
  func.func @transform_4(%arg0: i32) -> (i32, i32) {
    %c0_i32 = arith.constant 0 : i32
    %c0_i32_0 = arith.constant 0 : i32
    %c0_i32_1 = arith.constant 0 : i32
    return %c0_i32, %c0_i32_0 : i32, i32
  }
  func.func @transform_5(%arg0: i32) -> (i32, i32) {
    %c0_i32 = arith.constant 0 : i32
    %c0_i32_0 = arith.constant 0 : i32
    %c0_i32_1 = arith.constant 0 : i32
    return %c0_i32, %c0_i32_0 : i32, i32
  }
  func.func @transform_6(%arg0: i32) -> (i32, i32) {
    %c0_i32 = arith.constant 0 : i32
    %c0_i32_0 = arith.constant 0 : i32
    %c0_i32_1 = arith.constant 0 : i32
    return %c0_i32, %c0_i32_0 : i32, i32
  }
  func.func @transform_7(%arg0: i32) -> (i32, i32) {
    %c0_i32 = arith.constant 0 : i32
    %c0_i32_0 = arith.constant 0 : i32
    %c0_i32_1 = arith.constant 0 : i32
    return %c0_i32, %c0_i32_0 : i32, i32
  }
  func.func @transform_8(%arg0: i32) -> (i32, i32) {
    %c0_i32 = arith.constant 0 : i32
    %c0_i32_0 = arith.constant 0 : i32
    %c0_i32_1 = arith.constant 0 : i32
    return %c0_i32, %c0_i32_0 : i32, i32
  }
  func.func @transform_9(%arg0: i32) -> (i32, i32) {
    %c0_i32 = arith.constant 0 : i32
    %c0_i32_0 = arith.constant 0 : i32
    %c0_i32_1 = arith.constant 0 : i32
    return %c0_i32, %c0_i32_0 : i32, i32
  }
  func.func @transform_10(%arg0: i32) -> (i32, i32) {
    %c0_i32 = arith.constant 0 : i32
    %c0_i32_0 = arith.constant 0 : i32
    %c0_i32_1 = arith.constant 0 : i32
    return %c0_i32, %c0_i32_0 : i32, i32
  }
  func.func @transform_11(%arg0: i32) -> (i32, i32) {
    %c0_i32 = arith.constant 0 : i32
    %c0_i32_0 = arith.constant 0 : i32
    %c0_i32_1 = arith.constant 0 : i32
    return %c0_i32, %c0_i32_0 : i32, i32
  }
  func.func @transform_12(%arg0: i32) -> (i32, i32, i32) {
    %c0_i32 = arith.constant 0 : i32
    %c0_i32_0 = arith.constant 0 : i32
    %c0_i32_1 = arith.constant 0 : i32
    return %arg0, %c0_i32, %c0_i32_0 : i32, i32, i32
  }
}

</mosaic_0001>

<llo_original>
// kernel: conv_block_forward.2
$region0: #{conv_block_forward.2}
  #allocation0 [shape = 'u32[]', space=smem, size = 0x4, offset = 0x4, fixed_abs, tag = 'smem constant byte address 0x4 - core index']
  #allocation1 [shape = 'u32[144,128]{1,0:T(1,128)}', space=vmem, size = 0x12000, scoped, tag = 'internal scratch']
  %s0 = inlined_call_operand.vmem [shape: f32[2,8,256], index: 0, kind: input, shape index: {}]
  %s1 = inlined_call_operand.vmem [shape: f32[9,256], index: 1, kind: input, shape index: {}]
  %s2 = inlined_call_operand.vmem [shape: f32[16,72], index: 2, kind: input, shape index: {}]
  %s3 = inlined_call_operand.vmem [shape: f32[16,1], index: 3, kind: input, shape index: {}]
  %s4 = inlined_call_operand.vmem [shape: f32[2,16,256], index: 4, kind: output, shape index: {0}]
  %s5 = inlined_call_operand.vmem [shape: f32[2,16,1], index: 5, kind: output, shape index: {1}]
  %6 = xla_tuple %s4, %s5
  %s7 = sld [smem:[#allocation0]]
  $region57: #{conv_block_forward.2} parent=0
    _
  %s9 = ssub.s32 1, %s7
  %s10 = scalar_select 0, %s9, %s7
  loop: start=0, step=1, limit=4
  $region2: #{conv_block_forward.2} parent=0 // loop_pre_header
    _
  $region3: #{conv_block_forward.2} parent=0 // loop_header
    %s12 = sphi 0, %s16
    %p13 = scmp.ge.s32.totalorder %s12, 4
    %s22 = sphi 0, %s24
    %s25 = sphi 0, %s22
    %s26 = sphi 0, %s25
    %s42 = sphi 0, %s26
    %s46 = sphi 0, %s46
    %s48 = sphi 0, %s46
    %s49 = sphi 0, %s48
    %s63 = sphi 0, %s49
    %s67 = sphi 0, %s67
    %s69 = sphi 0, %s67
    %s70 = sphi 0, %s69
    %s84 = sphi 0, %s70
    %s88 = sphi 0, %s88
    %s90 = sphi 0, %s88
    %s91 = sphi 0, %s90
    %s105 = sphi 0, %s91
    %s111 = sphi 0, %s113
    %s114 = sphi 0, %s111
    %s115 = sphi 0, %s114
    %s131 = sphi 0, %s115
    %s137 = sphi 0, %s139
    %s140 = sphi 0, %s137
    %s141 = sphi 0, %s140
    %s157 = sphi 0, %s141
  $region4: #{conv_block_forward.2} parent=0 // loop_header_branch
    %15 = sbr.rel (%p13) target = $region8
  $region5: #{conv_block_forward.2} parent=0 // loop_body
    %s17 = ssub.s32 %s12, 1
    %s18 = ssub.s32 %s12, 2
    %s19 = sadd.s32 %s12, 1
    %s20 = ssub.s32 %s12, %s19
    %p21 = scmp.eq.s32.totalorder %s20, 0
    %s23 = sadd.s32 %s22, 1
    %s24 = scalar_select %p21, %s22, %s23
    %p27 = pneg %p21
    %p28 = scmp.eq.s32.totalorder %s12, 1
    %p29 = por %p27, %p28
    %p30 = scmp.ne.s32.totalorder %s22, %s25
    %p31 = scmp.eq.s32.totalorder %s12, 0
    %p32 = por %p30, %p31
    %p33 = scmp.ne.s32.totalorder %s22, %s25
    %p34 = scmp.eq.s32.totalorder %s17, 1
    %p35 = por %p33, %p34
    %p36 = scmp.ne.s32.totalorder %s25, %s26
    %p37 = scmp.eq.s32.totalorder %s17, 0
    %p38 = por %p36, %p37
    %p39 = scmp.ne.s32.totalorder %s25, %s26
    %p40 = scmp.eq.s32.totalorder %s18, 1
    %p41 = por %p39, %p40
    %p43 = scmp.ne.s32.totalorder %s26, %s42
    %p44 = scmp.eq.s32.totalorder %s18, 0
    %p45 = por %p43, %p44
    %s47 = sadd.s32 %s46, 1
    %p50 = scmp.eq.s32.totalorder %s12, 1
    %p51 = scmp.ne.s32.totalorder %s46, %s48
    %p52 = scmp.eq.s32.totalorder %s12, 0
    %p53 = por %p51, %p52
    %p54 = scmp.ne.s32.totalorder %s46, %s48
    %p55 = scmp.eq.s32.totalorder %s17, 1
    %p56 = por %p54, %p55
    %p57 = scmp.ne.s32.totalorder %s48, %s49
    %p58 = scmp.eq.s32.totalorder %s17, 0
    %p59 = por %p57, %p58
    %p60 = scmp.ne.s32.totalorder %s48, %s49
    %p61 = scmp.eq.s32.totalorder %s18, 1
    %p62 = por %p60, %p61
    %p64 = scmp.ne.s32.totalorder %s49, %s63
    %p65 = scmp.eq.s32.totalorder %s18, 0
    %p66 = por %p64, %p65
    %s68 = sadd.s32 %s67, 1
    %p71 = scmp.eq.s32.totalorder %s12, 1
    %p72 = scmp.ne.s32.totalorder %s67, %s69
    %p73 = scmp.eq.s32.totalorder %s12, 0
    %p74 = por %p72, %p73
    %p75 = scmp.ne.s32.totalorder %s67, %s69
    %p76 = scmp.eq.s32.totalorder %s17, 1
    %p77 = por %p75, %p76
    %p78 = scmp.ne.s32.totalorder %s69, %s70
    %p79 = scmp.eq.s32.totalorder %s17, 0
    %p80 = por %p78, %p79
    %p81 = scmp.ne.s32.totalorder %s69, %s70
    %p82 = scmp.eq.s32.totalorder %s18, 1
    %p83 = por %p81, %p82
    %p85 = scmp.ne.s32.totalorder %s70, %s84
    %p86 = scmp.eq.s32.totalorder %s18, 0
    %p87 = por %p85, %p86
    %s89 = sadd.s32 %s88, 1
    %p92 = scmp.eq.s32.totalorder %s12, 1
    %p93 = scmp.ne.s32.totalorder %s88, %s90
    %p94 = scmp.eq.s32.totalorder %s12, 0
    %p95 = por %p93, %p94
    %p96 = scmp.ne.s32.totalorder %s88, %s90
    %p97 = scmp.eq.s32.totalorder %s17, 1
    %p98 = por %p96, %p97
    %p99 = scmp.ne.s32.totalorder %s90, %s91
    %p100 = scmp.eq.s32.totalorder %s17, 0
    %p101 = por %p99, %p100
    %p102 = scmp.ne.s32.totalorder %s90, %s91
    %p103 = scmp.eq.s32.totalorder %s18, 1
    %p104 = por %p102, %p103
    %p106 = scmp.ne.s32.totalorder %s91, %s105
    %p107 = scmp.eq.s32.totalorder %s18, 0
    %p108 = por %p106, %p107
    %s109 = ssub.s32 %s12, %s19
    %p110 = scmp.eq.s32.totalorder %s109, 0
    %s112 = sadd.s32 %s111, 1
    %s113 = scalar_select %p110, %s111, %s112
    %p116 = pneg %p110
    %p117 = scmp.eq.s32.totalorder %s12, 1
    %p118 = por %p116, %p117
    %p119 = scmp.ne.s32.totalorder %s111, %s114
    %p120 = scmp.eq.s32.totalorder %s12, 0
    %p121 = por %p119, %p120
    %p122 = scmp.ne.s32.totalorder %s111, %s114
    %p123 = scmp.eq.s32.totalorder %s17, 1
    %p124 = por %p122, %p123
    %p125 = scmp.ne.s32.totalorder %s114, %s115
    %p126 = scmp.eq.s32.totalorder %s17, 0
    %p127 = por %p125, %p126
    %p128 = scmp.ne.s32.totalorder %s114, %s115
    %p129 = scmp.eq.s32.totalorder %s18, 1
    %p130 = por %p128, %p129
    %p132 = scmp.ne.s32.totalorder %s115, %s131
    %p133 = scmp.eq.s32.totalorder %s18, 0
    %p134 = por %p132, %p133
    %s135 = ssub.s32 %s12, %s19
    %p136 = scmp.eq.s32.totalorder %s135, 0
    %s138 = sadd.s32 %s137, 1
    %s139 = scalar_select %p136, %s137, %s138
    %p142 = pneg %p136
    %p143 = scmp.eq.s32.totalorder %s12, 1
    %p144 = por %p142, %p143
    %p145 = scmp.ne.s32.totalorder %s137, %s140
    %p146 = scmp.eq.s32.totalorder %s12, 0
    %p147 = por %p145, %p146
    %p148 = scmp.ne.s32.totalorder %s137, %s140
    %p149 = scmp.eq.s32.totalorder %s17, 1
    %p150 = por %p148, %p149
    %p151 = scmp.ne.s32.totalorder %s140, %s141
    %p152 = scmp.eq.s32.totalorder %s17, 0
    %p153 = por %p151, %p152
    %p154 = scmp.ne.s32.totalorder %s140, %s141
    %p155 = scmp.eq.s32.totalorder %s18, 1
    %p156 = por %p154, %p155
    %p158 = scmp.ne.s32.totalorder %s141, %s157
    %p159 = scmp.eq.s32.totalorder %s18, 0
    %p160 = por %p158, %p159
    %p161 = scmp.le.s32.totalorder 1, %s12
    %p162 = scmp.lt.s32.totalorder %s12, 3
    %p163 = pnand %p161, %p162
    %p164 = pneg %p163
    // Predicated region
    $region9: #{conv_block_forward.2} parent=5 // pred_check
      _
    $region10: #{conv_block_forward.2} parent=5 // pred_check_branch
      %166 = sbr.rel (%p163) target = $region12
    $region11: #{conv_block_forward.2} parent=5 // pred_region
      %s167 = ssub.s32 %s12, 1
      // Predicated region
      $region13: #{conv_block_forward.2} parent=11 // pred_check
        %p168 = pneg %p59
      $region14: #{conv_block_forward.2} parent=11 // pred_check_branch
        %170 = sbr.rel (%p168) target = $region16
      $region15: #{conv_block_forward.2} parent=11 // pred_region
        _
      $region16: #{conv_block_forward.2} parent=11 // pred_fallthru
        _
      // Predicated region
      $region17: #{conv_block_forward.2} parent=11 // pred_check
        %p171 = pneg %p80
      $region18: #{conv_block_forward.2} parent=11 // pred_check_branch
        %173 = sbr.rel (%p171) target = $region20
      $region19: #{conv_block_forward.2} parent=11 // pred_region
        _
      $region20: #{conv_block_forward.2} parent=11 // pred_fallthru
        _
      // Predicated region
      $region21: #{conv_block_forward.2} parent=11 // pred_check
        %p174 = pneg %p101
      $region22: #{conv_block_forward.2} parent=11 // pred_check_branch
        %176 = sbr.rel (%p174) target = $region24
      $region23: #{conv_block_forward.2} parent=11 // pred_region
        _
      $region24: #{conv_block_forward.2} parent=11 // pred_fallthru
        _
    $region12: #{conv_block_forward.2} parent=5 // pred_fallthru
      _
    %p177 = scmp.lt.s32.totalorder %s12, 2
    // Predicated region
    $region25: #{conv_block_forward.2} parent=5 // pred_check
      %p178 = pneg %p177
    $region26: #{conv_block_forward.2} parent=5 // pred_check_branch
      %180 = sbr.rel (%p178) target = $region28
    $region27: #{conv_block_forward.2} parent=5 // pred_region
      // Predicated region
      $region29: #{conv_block_forward.2} parent=27 // pred_check
        %p181 = pneg %p32
      $region30: #{conv_block_forward.2} parent=27 // pred_check_branch
        %183 = sbr.rel (%p181) target = $region32
      $region31: #{conv_block_forward.2} parent=27 // pred_region
        %p184 = scmp.lt.s32.totalorder %s12, 1
        %s185 = scalar_select %p184, %s12, 1
        %s186 = smul.addr %s185, 2
        %s187 = smul.addr %s186, 8
        %s188 = scalar_lea.vmem %s0, %s187
      $region32: #{conv_block_forward.2} parent=27 // pred_fallthru
        _
    $region28: #{conv_block_forward.2} parent=5 // pred_fallthru
      _
    %p189 = scmp.le.s32.totalorder 1, %s12
    %p190 = scmp.lt.s32.totalorder %s12, 3
    %p191 = pnand %p189, %p190
    %p192 = pneg %p191
    // Predicated region
    $region33: #{conv_block_forward.2} parent=5 // pred_check
      _
    $region34: #{conv_block_forward.2} parent=5 // pred_check_branch
      %194 = sbr.rel (%p191) target = $region36
    $region35: #{conv_block_forward.2} parent=5 // pred_region
      %s195 = ssub.s32 %s12, 1
      %p196 = scmp.lt.s32.totalorder %s17, 1
      %s197 = scalar_select %p196, %s17, 1
      %s198 = smul.addr %s197, 2
      %s199 = smul.addr %s198, 8
      %s200 = scalar_lea.vmem %s0, %s199
      %p201 = pneg %p38
      %p202 = pneg %p35
      %p203 = pneg %p59
      %p204 = pneg %p56
      %p205 = pneg %p80
      %p206 = pneg %p77
      %p207 = pneg %p101
      %p208 = pneg %p98
      %p209 = pneg %p127
      %p210 = pneg %p124
      %p211 = scmp.lt.s32.totalorder %s17, 1
      %s212 = scalar_select %p211, %s17, 1
      %s213 = smul.addr %s212, 4
      %s214 = smul.addr %s213, 8
      %s215 = scalar_lea.vmem %s4, %s214
      %p216 = pneg %p153
      %p217 = pneg %p150
      %p218 = scmp.lt.s32.totalorder %s17, 1
      %s219 = scalar_select %p218, %s17, 1
      %s220 = smul.addr %s219, 2
      %s221 = smul.addr %s220, 8
      %s222 = scalar_lea.vmem %s5, %s221
      %p223 = scmp.lt.s32.totalorder %s17, 1
      %s224 = scalar_select %p223, %s17, 1
      %s225 = smul.addr %s224, 2
      %s226 = smul.addr %s225, 8
      %s227 = scalar_lea.vmem %s0, %s226
      %p228 = scmp.lt.s32.totalorder %s17, 1
      %s229 = scalar_select %p228, %s17, 1
      %s230 = smul.addr %s229, 4
      %s231 = smul.addr %s230, 8
      %s232 = scalar_lea.vmem %s4, %s231
      %p233 = scmp.lt.s32.totalorder %s17, 1
      %s234 = scalar_select %p233, %s17, 1
      %s235 = smul.addr %s234, 2
      %s236 = smul.addr %s235, 8
      %s237 = scalar_lea.vmem %s5, %s236
      %v238 = vld [vmem:[%s227] sm:$0xff]
      %v239 = vld [vmem:[%s227 + $0x8] sm:$0xff]
      %240 = vrot.lane.b32.xlu0 %v238, 17
      %v241 = vpop.permute.xlu0 %240
      %242 = vrot.lane.b32.xlu0 %v239, 17
      %v243 = vpop.permute.xlu0 %242
      %v244 = vlaneseq
      %v245 = vand.u32 %v244, 127
      %vm246 = vcmp.lt.s32.totalorder %v245, 17
      %v247 = vsel %vm246, %v241, %v243
      %v248 = vsel %vm246, %v243, %v241
      %v249 = vld [vmem:[%s1] ss:$8 sm:$0x3]
      %v251 = vlaneseq
      %v252 = vshrl.u32 %v251, 7
      %v253 = vsub.s32 0, %v252
      %v254 = vrot.slane %v249, %v253
      %v255 = vlaneseq
      %v256 = vshrl.u32 %v255, 7
      %v257 = vsub.s32 1, %v256
      %v258 = vrot.slane %v249, %v257
      %v261 = vmul.f32 %v248, %v254
      %v262 = vmul.f32 %v247, %v258
      %263 = vrot.lane.b32.xlu0 %v238, 16
      %v264 = vpop.permute.xlu0 %263
      %265 = vrot.lane.b32.xlu0 %v239, 16
      %v266 = vpop.permute.xlu0 %265
      %vm267 = vcmp.lt.s32.totalorder %v245, 16
      %v268 = vsel %vm267, %v264, %v266
      %v269 = vsel %vm267, %v266, %v264
      %s270 = scalar_lea.vmem %s1, 1
      %v271 = vld [vmem:[%s270] ss:$8 sm:$0x3]
      %v273 = vlaneseq
      %v274 = vshrl.u32 %v273, 7
      %v275 = vsub.s32 0, %v274
      %v276 = vrot.slane %v271, %v275
      %v277 = vlaneseq
      %v278 = vshrl.u32 %v277, 7
      %v279 = vsub.s32 1, %v278
      %v280 = vrot.slane %v271, %v279
      %v283 = vmul.f32 %v269, %v276
      %v284 = vmul.f32 %v268, %v280
      %285 = vrot.lane.b32.xlu0 %v238, 15
      %v286 = vpop.permute.xlu0 %285
      %287 = vrot.lane.b32.xlu0 %v239, 15
      %v288 = vpop.permute.xlu0 %287
      %vm289 = vcmp.lt.s32.totalorder %v245, 15
      %v290 = vsel %vm289, %v286, %v288
      %v291 = vsel %vm289, %v288, %v286
      %s292 = scalar_lea.vmem %s1, 2
      %v293 = vld [vmem:[%s292] ss:$8 sm:$0x3]
      %v295 = vlaneseq
      %v296 = vshrl.u32 %v295, 7
      %v297 = vsub.s32 0, %v296
      %v298 = vrot.slane %v293, %v297
      %v299 = vlaneseq
      %v300 = vshrl.u32 %v299, 7
      %v301 = vsub.s32 1, %v300
      %v302 = vrot.slane %v293, %v301
      %v305 = vmul.f32 %v291, %v298
      %v306 = vmul.f32 %v290, %v302
      %307 = vrot.lane.b32.xlu0 %v238, 1
      %v308 = vpop.permute.xlu0 %307
      %309 = vrot.lane.b32.xlu0 %v239, 1
      %v310 = vpop.permute.xlu0 %309
      %vm311 = vcmp.lt.s32.totalorder %v245, 1
      %v312 = vsel %vm311, %v308, %v310
      %v313 = vsel %vm311, %v310, %v308
      %s314 = scalar_lea.vmem %s1, 3
      %v315 = vld [vmem:[%s314] ss:$8 sm:$0x3]
      %v317 = vlaneseq
      %v318 = vshrl.u32 %v317, 7
      %v319 = vsub.s32 0, %v318
      %v320 = vrot.slane %v315, %v319
      %v321 = vlaneseq
      %v322 = vshrl.u32 %v321, 7
      %v323 = vsub.s32 1, %v322
      %v324 = vrot.slane %v315, %v323
      %v327 = vmul.f32 %v313, %v320
      %v328 = vmul.f32 %v312, %v324
      %329 = vrot.lane.b32.xlu0 %v238, 127
      %v330 = vpop.permute.xlu0 %329
      %331 = vrot.lane.b32.xlu0 %v239, 127
      %v332 = vpop.permute.xlu0 %331
      %vm333 = vcmp.lt.s32.totalorder %v245, 127
      %v334 = vsel %vm333, %v330, %v332
      %v335 = vsel %vm333, %v332, %v330
      %s336 = scalar_lea.vmem %s1, 5
      %v337 = vld [vmem:[%s336] ss:$8 sm:$0x3]
      %v339 = vlaneseq
      %v340 = vshrl.u32 %v339, 7
      %v341 = vsub.s32 0, %v340
      %v342 = vrot.slane %v337, %v341
      %v343 = vlaneseq
      %v344 = vshrl.u32 %v343, 7
      %v345 = vsub.s32 1, %v344
      %v346 = vrot.slane %v337, %v345
      %v349 = vmul.f32 %v334, %v342
      %v350 = vmul.f32 %v335, %v346
      %351 = vrot.lane.b32.xlu0 %v238, 113
      %v352 = vpop.permute.xlu0 %351
      %353 = vrot.lane.b32.xlu0 %v239, 113
      %v354 = vpop.permute.xlu0 %353
      %vm355 = vcmp.lt.s32.totalorder %v245, 113
      %v356 = vsel %vm355, %v352, %v354
      %v357 = vsel %vm355, %v354, %v352
      %s358 = scalar_lea.vmem %s1, 6
      %v359 = vld [vmem:[%s358] ss:$8 sm:$0x3]
      %v361 = vlaneseq
      %v362 = vshrl.u32 %v361, 7
      %v363 = vsub.s32 0, %v362
      %v364 = vrot.slane %v359, %v363
      %v365 = vlaneseq
      %v366 = vshrl.u32 %v365, 7
      %v367 = vsub.s32 1, %v366
      %v368 = vrot.slane %v359, %v367
      %v371 = vmul.f32 %v356, %v364
      %v372 = vmul.f32 %v357, %v368
      %373 = vrot.lane.b32.xlu0 %v238, 112
      %v374 = vpop.permute.xlu0 %373
      %375 = vrot.lane.b32.xlu0 %v239, 112
      %v376 = vpop.permute.xlu0 %375
      %vm377 = vcmp.lt.s32.totalorder %v245, 112
      %v378 = vsel %vm377, %v374, %v376
      %v379 = vsel %vm377, %v376, %v374
      %s380 = scalar_lea.vmem %s1, 7
      %v381 = vld [vmem:[%s380] ss:$8 sm:$0x3]
      %v383 = vlaneseq
      %v384 = vshrl.u32 %v383, 7
      %v385 = vsub.s32 0, %v384
      %v386 = vrot.slane %v381, %v385
      %v387 = vlaneseq
      %v388 = vshrl.u32 %v387, 7
      %v389 = vsub.s32 1, %v388
      %v390 = vrot.slane %v381, %v389
      %v393 = vmul.f32 %v378, %v386
      %v394 = vmul.f32 %v379, %v390
      %395 = vrot.lane.b32.xlu0 %v238, 111
      %v396 = vpop.permute.xlu0 %395
      %397 = vrot.lane.b32.xlu0 %v239, 111
      %v398 = vpop.permute.xlu0 %397
      %vm399 = vcmp.lt.s32.totalorder %v245, 111
      %v400 = vsel %vm399, %v396, %v398
      %v401 = vsel %vm399, %v398, %v396
      %s402 = scalar_lea.vmem %s1, 16
      %v403 = vld [vmem:[%s402] ss:$8 sm:$0x3]
      %v405 = vlaneseq
      %v406 = vshrl.u32 %v405, 7
      %v407 = vsub.s32 0, %v406
      %v408 = vrot.slane %v403, %v407
      %v409 = vlaneseq
      %v410 = vshrl.u32 %v409, 7
      %v411 = vsub.s32 1, %v410
      %v412 = vrot.slane %v403, %v411
      %v415 = vmul.f32 %v400, %v408
      %v416 = vmul.f32 %v401, %v412
      %v417 = vld [vmem:[%s2] sm:$0xff]
      %v418 = vld [vmem:[%s2 + $0x8] sm:$0xff]
      %v419 = vld [vmem:[%s3] sm:$0xff]
      %v420 = vld [vmem:[%s3 + $0x8] sm:$0xff]
      %422 = vset.pattern.permute.xlu0 0
      %423 = vperm.xlu0 %422, %v419
      %v424 = vpop.permute.xlu0 %423
      %427 = vset.pattern.permute.xlu0 0
      %428 = vperm.xlu0 %427, %v420
      %v429 = vpop.permute.xlu0 %428
      %vm431 = vcmask 588800
      %v433 = vsel %vm431, %v417, 0
      %v436 = vsel %vm431, %v418, 0
      %438 = vmatprep.subr.mxu0 0.0
      %439 = vmatpush1.msra.mxu0 0.0
      %440 = vmatprep.subr.mxu0 0.0
      %441 = vmatpush1.msra.mxu0 0.0
      %442 = vmatprep.subr.mxu0 0.0
      %443 = vmatpush1.msra.mxu0 0.0
      %444 = vmatprep.subr.mxu0 0.0
      %445 = vmatpush1.msra.mxu0 0.0
      %446 = vmatprep.subr.mxu0 0.0
      %447 = vmatpush1.msra.mxu0 0.0
      %448 = vmatprep.subr.mxu0 0.0
      %449 = vmatpush1.msra.mxu0 0.0
      %450 = vmatprep.subr.mxu0 0.0
      %451 = vmatpush1.msra.mxu0 0.0
      %452 = vmatprep.subr.mxu0 %v416
      %453 = vmatpush1.msra.mxu0 %v415
      %454 = vmatprep.subr.mxu0 %v394
      %455 = vmatpush1.msra.mxu0 %v393
      %456 = vmatprep.subr.mxu0 %v372
      %457 = vmatpush1.msra.mxu0 %v371
      %458 = vmatprep.subr.mxu0 %v350
      %459 = vmatpush1.msra.mxu0 %v349
      %460 = vmatprep.subr.mxu0 %v239
      %461 = vmatpush1.msra.mxu0 %v238
      %462 = vmatprep.subr.mxu0 %v328
      %463 = vmatpush1.msra.mxu0 %v327
      %464 = vmatprep.subr.mxu0 %v306
      %465 = vmatpush1.msra.mxu0 %v305
      %466 = vmatprep.subr.mxu0 %v284
      %467 = vmatpush1.msra.mxu0 %v283
      %468 = vmatprep.subr.mxu0 %v262
      %469 = vmatpush1.msra.mxu0 %v261
      %470 = vmatprep.subr.mxu0 0.0
      %471 = vmatpush2.msra.mxu0 0.0
      %472 = vmatprep.subr.mxu0 0.0
      %473 = vmatpush2.msra.mxu0 0.0
      %474 = vmatprep.subr.mxu0 0.0
      %475 = vmatpush2.msra.mxu0 0.0
      %476 = vmatprep.subr.mxu0 0.0
      %477 = vmatpush2.msra.mxu0 0.0
      %478 = vmatprep.subr.mxu0 0.0
      %479 = vmatpush2.msra.mxu0 0.0
      %480 = vmatprep.subr.mxu0 0.0
      %481 = vmatpush2.msra.mxu0 0.0
      %482 = vmatprep.subr.mxu0 0.0
      %483 = vmatpush2.msra.mxu0 0.0
      %484 = vmatprep.subr.mxu0 0.0
      %485 = vmatpush2.msra.mxu0 0.0
      %486 = vmatprep.subr.mxu0 0.0
      %487 = vmatpush2.msra.mxu0 0.0
      %488 = vmatprep.subr.mxu0 0.0
      %489 = vmatpush2.msra.mxu0 0.0
      %490 = vmatprep.subr.mxu0 0.0
      %491 = vmatpush2.msra.mxu0 0.0
      %492 = vmatprep.subr.mxu0 0.0
      %493 = vmatpush2.msra.mxu0 0.0
      %494 = vmatprep.subr.mxu0 0.0
      %495 = vmatpush2.msra.mxu0 0.0
      %496 = vmatprep.subr.mxu0 0.0
      %497 = vmatpush2.msra.mxu0 0.0
      %498 = vmatprep.subr.mxu0 0.0
      %499 = vmatpush2.msra.mxu0 0.0
      %500 = vmatprep.subr.mxu0 0.0
      %501 = vmatpush2.msra.mxu0 0.0
      %502 = vmatprep.mubr.f32.mxu0 0.0
      %503 = vmatmul.mubr.f32.gmra.mxu0 %v433
      %v504 = vpop.f32.mrf.mxu0
      %v505 = vadd.f32 %v424, %v504
      %v506 = vpop.f32.mrf.mxu0
      %v507 = vadd.f32 %v424, %v506
      %508 = vmatprep.mubr.f32.mxu0 0.0
      %509 = vmatmul.mubr.f32.gmra.mxu0 %v436
      %v510 = vpop.f32.mrf.mxu0
      %v511 = vadd.f32 %v429, %v510
      %v512 = vpop.f32.mrf.mxu0
      %v513 = vadd.f32 %v429, %v512
      %514 = vdwg.mxu0
      %v515 = vmax.f32 %v505, 0.0
      %v516 = vmax.f32 %v507, 0.0
      %v517 = vmax.f32 %v511, 0.0
      %v518 = vmax.f32 %v513, 0.0
      %519 = vst [vmem:[%s232] sm:$0xff] %v515
      %520 = vst [vmem:[%s232 + $0x8] sm:$0xff] %v516
      %521 = vst [vmem:[%s232 + $0x10] sm:$0xff] %v517
      %522 = vst [vmem:[%s232 + $0x18] sm:$0xff] %v518
      %v523 = vadd.f32 %v515, %v516
      %524 = vadd.xlane.f32.xlu0 %v523
      %v525 = vpop.xlane.xlu0 %524
      %v526 = vadd.f32 %v517, %v518
      %527 = vadd.xlane.f32.xlu0 %v526
      %v528 = vpop.xlane.xlu0 %527
      %v529 = vrcp.pop 256.0
      %v530 = vmul.f32 %v525, %v529
      %v531 = vmul.f32 %v528, %v529
      %vm532 = vcmask 7168
      %533 = vst.msk [vmem:[%s237] sm:$0xff] %vm532, %v530
      %534 = vst.msk [vmem:[%s237 + $0x8] sm:$0xff] %vm532, %v531
      %p535 = scmp.lt.s32.totalorder %s17, 1
      %s536 = scalar_select %p535, %s17, 1
      %s537 = smul.addr %s536, 4
      %s538 = smul.addr %s537, 8
      %s539 = scalar_lea.vmem %s4, %s538
      %p540 = scmp.lt.s32.totalorder %s17, 1
      %s541 = scalar_select %p540, %s17, 1
      %s542 = smul.addr %s541, 2
      %s543 = smul.addr %s542, 8
      %s544 = scalar_lea.vmem %s5, %s543
      // Predicated region
      $region37: #{conv_block_forward.2} parent=35 // pred_check
        %p545 = pneg %p124
      $region38: #{conv_block_forward.2} parent=35 // pred_check_branch
        %547 = sbr.rel (%p545) target = $region40
      $region39: #{conv_block_forward.2} parent=35 // pred_region
        _
      $region40: #{conv_block_forward.2} parent=35 // pred_fallthru
        _
      // Predicated region
      $region41: #{conv_block_forward.2} parent=35 // pred_check
        %p548 = pneg %p150
      $region42: #{conv_block_forward.2} parent=35 // pred_check_branch
        %550 = sbr.rel (%p548) target = $region44
      $region43: #{conv_block_forward.2} parent=35 // pred_region
        _
      $region44: #{conv_block_forward.2} parent=35 // pred_fallthru
        _
    $region36: #{conv_block_forward.2} parent=5 // pred_fallthru
      _
    %p551 = scmp.le.s32.totalorder 2, %s12
    // Predicated region
    $region45: #{conv_block_forward.2} parent=5 // pred_check
      %p552 = pneg %p551
    $region46: #{conv_block_forward.2} parent=5 // pred_check_branch
      %554 = sbr.rel (%p552) target = $region48
    $region47: #{conv_block_forward.2} parent=5 // pred_region
      %s555 = ssub.s32 %s12, 2
      // Predicated region
      $region49: #{conv_block_forward.2} parent=47 // pred_check
        %p556 = pneg %p130
      $region50: #{conv_block_forward.2} parent=47 // pred_check_branch
        %558 = sbr.rel (%p556) target = $region52
      $region51: #{conv_block_forward.2} parent=47 // pred_region
        %p559 = scmp.lt.s32.totalorder %s18, 1
        %s560 = scalar_select %p559, %s18, 1
        %s561 = smul.addr %s560, 4
        %s562 = smul.addr %s561, 8
        %s563 = scalar_lea.vmem %s4, %s562
      $region52: #{conv_block_forward.2} parent=47 // pred_fallthru
        _
      // Predicated region
      $region53: #{conv_block_forward.2} parent=47 // pred_check
        %p564 = pneg %p156
      $region54: #{conv_block_forward.2} parent=47 // pred_check_branch
        %566 = sbr.rel (%p564) target = $region56
      $region55: #{conv_block_forward.2} parent=47 // pred_region
        %p567 = scmp.lt.s32.totalorder %s18, 1
        %s568 = scalar_select %p567, %s18, 1
        %s569 = smul.addr %s568, 2
        %s570 = smul.addr %s569, 8
        %s571 = scalar_lea.vmem %s5, %s570
      $region56: #{conv_block_forward.2} parent=47 // pred_fallthru
        _
    $region48: #{conv_block_forward.2} parent=5 // pred_fallthru
      _
  $region6: #{conv_block_forward.2} parent=0 // loop_footer
    %s16 = sadd.s32 1, %s12
  $region7: #{conv_block_forward.2} parent=0 // loop_footer_branch
    %11 = sbr.rel target = $region3
  $region8: #{conv_block_forward.2} parent=0 // loop_exit
    _

// kernel: conv_block_forward.3
$region0: #{conv_block_forward.3}
  #allocation0 [shape = 'u32[]', space=smem, size = 0x4, offset = 0x4, fixed_abs, tag = 'smem constant byte address 0x4 - core index']
  #allocation1 [shape = 'u32[144,128]{1,0:T(1,128)}', space=vmem, size = 0x12000, scoped, tag = 'internal scratch']
  %s0 = inlined_call_operand.vmem [shape: f32[2,16,256], index: 0, kind: input, shape index: {}]
  %s1 = inlined_call_operand.vmem [shape: f32[9,256], index: 1, kind: input, shape index: {}]
  %s2 = inlined_call_operand.vmem [shape: f32[2,4,4], index: 2, kind: input, shape index: {}]
  %s3 = inlined_call_operand.vmem [shape: f32[2,16,1], index: 3, kind: input, shape index: {}]
  %s4 = inlined_call_operand.vmem [shape: f32[16,144], index: 4, kind: input, shape index: {}]
  %s5 = inlined_call_operand.vmem [shape: f32[4,16], index: 5, kind: input, shape index: {}]
  %s6 = inlined_call_operand.vmem [shape: f32[4,1], index: 6, kind: input, shape index: {}]
  %s7 = inlined_call_operand.vmem [shape: f32[4,1], index: 7, kind: input, shape index: {}]
  %s8 = inlined_call_operand.vmem [shape: f32[4,1], index: 8, kind: input, shape index: {}]
  %s9 = inlined_call_operand.vmem [shape: f32[16,4], index: 9, kind: input, shape index: {}]
  %s10 = inlined_call_operand.vmem [shape: f32[16,1], index: 10, kind: input, shape index: {}]
  %s11 = inlined_call_operand.vmem [shape: f32[16,1], index: 11, kind: input, shape index: {}]
  %s12 = inlined_call_operand.vmem [shape: f32[2,16,256], index: 12, kind: output, shape index: {}]
  %s13 = sld [smem:[#allocation0]]
  $region81: #{conv_block_forward.3} parent=0
    _
  %s15 = ssub.s32 1, %s13
  %s16 = scalar_select 0, %s15, %s13
  loop: start=0, step=1, limit=4
  $region2: #{conv_block_forward.3} parent=0 // loop_pre_header
    _
  $region3: #{conv_block_forward.3} parent=0 // loop_header
    %s18 = sphi 0, %s22
    %p19 = scmp.ge.s32.totalorder %s18, 4
    %s28 = sphi 0, %s30
    %s31 = sphi 0, %s28
    %s32 = sphi 0, %s31
    %s48 = sphi 0, %s32
    %s52 = sphi 0, %s52
    %s54 = sphi 0, %s52
    %s55 = sphi 0, %s54
    %s69 = sphi 0, %s55
    %s75 = sphi 0, %s77
    %s78 = sphi 0, %s75
    %s79 = sphi 0, %s78
    %s95 = sphi 0, %s79
    %s101 = sphi 0, %s103
    %s104 = sphi 0, %s101
    %s105 = sphi 0, %s104
    %s121 = sphi 0, %s105
    %s125 = sphi 0, %s125
    %s127 = sphi 0, %s125
    %s128 = sphi 0, %s127
    %s142 = sphi 0, %s128
    %s146 = sphi 0, %s146
    %s148 = sphi 0, %s146
    %s149 = sphi 0, %s148
    %s163 = sphi 0, %s149
    %s167 = sphi 0, %s167
    %s169 = sphi 0, %s167
    %s170 = sphi 0, %s169
    %s184 = sphi 0, %s170
    %s188 = sphi 0, %s188
    %s190 = sphi 0, %s188
    %s191 = sphi 0, %s190
    %s205 = sphi 0, %s191
    %s209 = sphi 0, %s209
    %s211 = sphi 0, %s209
    %s212 = sphi 0, %s211
    %s226 = sphi 0, %s212
    %s230 = sphi 0, %s230
    %s232 = sphi 0, %s230
    %s233 = sphi 0, %s232
    %s247 = sphi 0, %s233
    %s251 = sphi 0, %s251
    %s253 = sphi 0, %s251
    %s254 = sphi 0, %s253
    %s268 = sphi 0, %s254
    %s272 = sphi 0, %s272
    %s274 = sphi 0, %s272
    %s275 = sphi 0, %s274
    %s289 = sphi 0, %s275
    %s295 = sphi 0, %s297
    %s298 = sphi 0, %s295
    %s299 = sphi 0, %s298
    %s315 = sphi 0, %s299
  $region4: #{conv_block_forward.3} parent=0 // loop_header_branch
    %21 = sbr.rel (%p19) target = $region8
  $region5: #{conv_block_forward.3} parent=0 // loop_body
    %s23 = ssub.s32 %s18, 1
    %s24 = ssub.s32 %s18, 2
    %s25 = sadd.s32 %s18, 1
    %s26 = ssub.s32 %s18, %s25
    %p27 = scmp.eq.s32.totalorder %s26, 0
    %s29 = sadd.s32 %s28, 1
    %s30 = scalar_select %p27, %s28, %s29
    %p33 = pneg %p27
    %p34 = scmp.eq.s32.totalorder %s18, 1
    %p35 = por %p33, %p34
    %p36 = scmp.ne.s32.totalorder %s28, %s31
    %p37 = scmp.eq.s32.totalorder %s18, 0
    %p38 = por %p36, %p37
    %p39 = scmp.ne.s32.totalorder %s28, %s31
    %p40 = scmp.eq.s32.totalorder %s23, 1
    %p41 = por %p39, %p40
    %p42 = scmp.ne.s32.totalorder %s31, %s32
    %p43 = scmp.eq.s32.totalorder %s23, 0
    %p44 = por %p42, %p43
    %p45 = scmp.ne.s32.totalorder %s31, %s32
    %p46 = scmp.eq.s32.totalorder %s24, 1
    %p47 = por %p45, %p46
    %p49 = scmp.ne.s32.totalorder %s32, %s48
    %p50 = scmp.eq.s32.totalorder %s24, 0
    %p51 = por %p49, %p50
    %s53 = sadd.s32 %s52, 1
    %p56 = scmp.eq.s32.totalorder %s18, 1
    %p57 = scmp.ne.s32.totalorder %s52, %s54
    %p58 = scmp.eq.s32.totalorder %s18, 0
    %p59 = por %p57, %p58
    %p60 = scmp.ne.s32.totalorder %s52, %s54
    %p61 = scmp.eq.s32.totalorder %s23, 1
    %p62 = por %p60, %p61
    %p63 = scmp.ne.s32.totalorder %s54, %s55
    %p64 = scmp.eq.s32.totalorder %s23, 0
    %p65 = por %p63, %p64
    %p66 = scmp.ne.s32.totalorder %s54, %s55
    %p67 = scmp.eq.s32.totalorder %s24, 1
    %p68 = por %p66, %p67
    %p70 = scmp.ne.s32.totalorder %s55, %s69
    %p71 = scmp.eq.s32.totalorder %s24, 0
    %p72 = por %p70, %p71
    %s73 = ssub.s32 %s18, %s25
    %p74 = scmp.eq.s32.totalorder %s73, 0
    %s76 = sadd.s32 %s75, 1
    %s77 = scalar_select %p74, %s75, %s76
    %p80 = pneg %p74
    %p81 = scmp.eq.s32.totalorder %s18, 1
    %p82 = por %p80, %p81
    %p83 = scmp.ne.s32.totalorder %s75, %s78
    %p84 = scmp.eq.s32.totalorder %s18, 0
    %p85 = por %p83, %p84
    %p86 = scmp.ne.s32.totalorder %s75, %s78
    %p87 = scmp.eq.s32.totalorder %s23, 1
    %p88 = por %p86, %p87
    %p89 = scmp.ne.s32.totalorder %s78, %s79
    %p90 = scmp.eq.s32.totalorder %s23, 0
    %p91 = por %p89, %p90
    %p92 = scmp.ne.s32.totalorder %s78, %s79
    %p93 = scmp.eq.s32.totalorder %s24, 1
    %p94 = por %p92, %p93
    %p96 = scmp.ne.s32.totalorder %s79, %s95
    %p97 = scmp.eq.s32.totalorder %s24, 0
    %p98 = por %p96, %p97
    %s99 = ssub.s32 %s18, %s25
    %p100 = scmp.eq.s32.totalorder %s99, 0
    %s102 = sadd.s32 %s101, 1
    %s103 = scalar_select %p100, %s101, %s102
    %p106 = pneg %p100
    %p107 = scmp.eq.s32.totalorder %s18, 1
    %p108 = por %p106, %p107
    %p109 = scmp.ne.s32.totalorder %s101, %s104
    %p110 = scmp.eq.s32.totalorder %s18, 0
    %p111 = por %p109, %p110
    %p112 = scmp.ne.s32.totalorder %s101, %s104
    %p113 = scmp.eq.s32.totalorder %s23, 1
    %p114 = por %p112, %p113
    %p115 = scmp.ne.s32.totalorder %s104, %s105
    %p116 = scmp.eq.s32.totalorder %s23, 0
    %p117 = por %p115, %p116
    %p118 = scmp.ne.s32.totalorder %s104, %s105
    %p119 = scmp.eq.s32.totalorder %s24, 1
    %p120 = por %p118, %p119
    %p122 = scmp.ne.s32.totalorder %s105, %s121
    %p123 = scmp.eq.s32.totalorder %s24, 0
    %p124 = por %p122, %p123
    %s126 = sadd.s32 %s125, 1
    %p129 = scmp.eq.s32.totalorder %s18, 1
    %p130 = scmp.ne.s32.totalorder %s125, %s127
    %p131 = scmp.eq.s32.totalorder %s18, 0
    %p132 = por %p130, %p131
    %p133 = scmp.ne.s32.totalorder %s125, %s127
    %p134 = scmp.eq.s32.totalorder %s23, 1
    %p135 = por %p133, %p134
    %p136 = scmp.ne.s32.totalorder %s127, %s128
    %p137 = scmp.eq.s32.totalorder %s23, 0
    %p138 = por %p136, %p137
    %p139 = scmp.ne.s32.totalorder %s127, %s128
    %p140 = scmp.eq.s32.totalorder %s24, 1
    %p141 = por %p139, %p140
    %p143 = scmp.ne.s32.totalorder %s128, %s142
    %p144 = scmp.eq.s32.totalorder %s24, 0
    %p145 = por %p143, %p144
    %s147 = sadd.s32 %s146, 1
    %p150 = scmp.eq.s32.totalorder %s18, 1
    %p151 = scmp.ne.s32.totalorder %s146, %s148
    %p152 = scmp.eq.s32.totalorder %s18, 0
    %p153 = por %p151, %p152
    %p154 = scmp.ne.s32.totalorder %s146, %s148
    %p155 = scmp.eq.s32.totalorder %s23, 1
    %p156 = por %p154, %p155
    %p157 = scmp.ne.s32.totalorder %s148, %s149
    %p158 = scmp.eq.s32.totalorder %s23, 0
    %p159 = por %p157, %p158
    %p160 = scmp.ne.s32.totalorder %s148, %s149
    %p161 = scmp.eq.s32.totalorder %s24, 1
    %p162 = por %p160, %p161
    %p164 = scmp.ne.s32.totalorder %s149, %s163
    %p165 = scmp.eq.s32.totalorder %s24, 0
    %p166 = por %p164, %p165
    %s168 = sadd.s32 %s167, 1
    %p171 = scmp.eq.s32.totalorder %s18, 1
    %p172 = scmp.ne.s32.totalorder %s167, %s169
    %p173 = scmp.eq.s32.totalorder %s18, 0
    %p174 = por %p172, %p173
    %p175 = scmp.ne.s32.totalorder %s167, %s169
    %p176 = scmp.eq.s32.totalorder %s23, 1
    %p177 = por %p175, %p176
    %p178 = scmp.ne.s32.totalorder %s169, %s170
    %p179 = scmp.eq.s32.totalorder %s23, 0
    %p180 = por %p178, %p179
    %p181 = scmp.ne.s32.totalorder %s169, %s170
    %p182 = scmp.eq.s32.totalorder %s24, 1
    %p183 = por %p181, %p182
    %p185 = scmp.ne.s32.totalorder %s170, %s184
    %p186 = scmp.eq.s32.totalorder %s24, 0
    %p187 = por %p185, %p186
    %s189 = sadd.s32 %s188, 1
    %p192 = scmp.eq.s32.totalorder %s18, 1
    %p193 = scmp.ne.s32.totalorder %s188, %s190
    %p194 = scmp.eq.s32.totalorder %s18, 0
    %p195 = por %p193, %p194
    %p196 = scmp.ne.s32.totalorder %s188, %s190
    %p197 = scmp.eq.s32.totalorder %s23, 1
    %p198 = por %p196, %p197
    %p199 = scmp.ne.s32.totalorder %s190, %s191
    %p200 = scmp.eq.s32.totalorder %s23, 0
    %p201 = por %p199, %p200
    %p202 = scmp.ne.s32.totalorder %s190, %s191
    %p203 = scmp.eq.s32.totalorder %s24, 1
    %p204 = por %p202, %p203
    %p206 = scmp.ne.s32.totalorder %s191, %s205
    %p207 = scmp.eq.s32.totalorder %s24, 0
    %p208 = por %p206, %p207
    %s210 = sadd.s32 %s209, 1
    %p213 = scmp.eq.s32.totalorder %s18, 1
    %p214 = scmp.ne.s32.totalorder %s209, %s211
    %p215 = scmp.eq.s32.totalorder %s18, 0
    %p216 = por %p214, %p215
    %p217 = scmp.ne.s32.totalorder %s209, %s211
    %p218 = scmp.eq.s32.totalorder %s23, 1
    %p219 = por %p217, %p218
    %p220 = scmp.ne.s32.totalorder %s211, %s212
    %p221 = scmp.eq.s32.totalorder %s23, 0
    %p222 = por %p220, %p221
    %p223 = scmp.ne.s32.totalorder %s211, %s212
    %p224 = scmp.eq.s32.totalorder %s24, 1
    %p225 = por %p223, %p224
    %p227 = scmp.ne.s32.totalorder %s212, %s226
    %p228 = scmp.eq.s32.totalorder %s24, 0
    %p229 = por %p227, %p228
    %s231 = sadd.s32 %s230, 1
    %p234 = scmp.eq.s32.totalorder %s18, 1
    %p235 = scmp.ne.s32.totalorder %s230, %s232
    %p236 = scmp.eq.s32.totalorder %s18, 0
    %p237 = por %p235, %p236
    %p238 = scmp.ne.s32.totalorder %s230, %s232
    %p239 = scmp.eq.s32.totalorder %s23, 1
    %p240 = por %p238, %p239
    %p241 = scmp.ne.s32.totalorder %s232, %s233
    %p242 = scmp.eq.s32.totalorder %s23, 0
    %p243 = por %p241, %p242
    %p244 = scmp.ne.s32.totalorder %s232, %s233
    %p245 = scmp.eq.s32.totalorder %s24, 1
    %p246 = por %p244, %p245
    %p248 = scmp.ne.s32.totalorder %s233, %s247
    %p249 = scmp.eq.s32.totalorder %s24, 0
    %p250 = por %p248, %p249
    %s252 = sadd.s32 %s251, 1
    %p255 = scmp.eq.s32.totalorder %s18, 1
    %p256 = scmp.ne.s32.totalorder %s251, %s253
    %p257 = scmp.eq.s32.totalorder %s18, 0
    %p258 = por %p256, %p257
    %p259 = scmp.ne.s32.totalorder %s251, %s253
    %p260 = scmp.eq.s32.totalorder %s23, 1
    %p261 = por %p259, %p260
    %p262 = scmp.ne.s32.totalorder %s253, %s254
    %p263 = scmp.eq.s32.totalorder %s23, 0
    %p264 = por %p262, %p263
    %p265 = scmp.ne.s32.totalorder %s253, %s254
    %p266 = scmp.eq.s32.totalorder %s24, 1
    %p267 = por %p265, %p266
    %p269 = scmp.ne.s32.totalorder %s254, %s268
    %p270 = scmp.eq.s32.totalorder %s24, 0
    %p271 = por %p269, %p270
    %s273 = sadd.s32 %s272, 1
    %p276 = scmp.eq.s32.totalorder %s18, 1
    %p277 = scmp.ne.s32.totalorder %s272, %s274
    %p278 = scmp.eq.s32.totalorder %s18, 0
    %p279 = por %p277, %p278
    %p280 = scmp.ne.s32.totalorder %s272, %s274
    %p281 = scmp.eq.s32.totalorder %s23, 1
    %p282 = por %p280, %p281
    %p283 = scmp.ne.s32.totalorder %s274, %s275
    %p284 = scmp.eq.s32.totalorder %s23, 0
    %p285 = por %p283, %p284
    %p286 = scmp.ne.s32.totalorder %s274, %s275
    %p287 = scmp.eq.s32.totalorder %s24, 1
    %p288 = por %p286, %p287
    %p290 = scmp.ne.s32.totalorder %s275, %s289
    %p291 = scmp.eq.s32.totalorder %s24, 0
    %p292 = por %p290, %p291
    %s293 = ssub.s32 %s18, %s25
    %p294 = scmp.eq.s32.totalorder %s293, 0
    %s296 = sadd.s32 %s295, 1
    %s297 = scalar_select %p294, %s295, %s296
    %p300 = pneg %p294
    %p301 = scmp.eq.s32.totalorder %s18, 1
    %p302 = por %p300, %p301
    %p303 = scmp.ne.s32.totalorder %s295, %s298
    %p304 = scmp.eq.s32.totalorder %s18, 0
    %p305 = por %p303, %p304
    %p306 = scmp.ne.s32.totalorder %s295, %s298
    %p307 = scmp.eq.s32.totalorder %s23, 1
    %p308 = por %p306, %p307
    %p309 = scmp.ne.s32.totalorder %s298, %s299
    %p310 = scmp.eq.s32.totalorder %s23, 0
    %p311 = por %p309, %p310
    %p312 = scmp.ne.s32.totalorder %s298, %s299
    %p313 = scmp.eq.s32.totalorder %s24, 1
    %p314 = por %p312, %p313
    %p316 = scmp.ne.s32.totalorder %s299, %s315
    %p317 = scmp.eq.s32.totalorder %s24, 0
    %p318 = por %p316, %p317
    %p319 = scmp.le.s32.totalorder 1, %s18
    %p320 = scmp.lt.s32.totalorder %s18, 3
    %p321 = pnand %p319, %p320
    %p322 = pneg %p321
    // Predicated region
    $region9: #{conv_block_forward.3} parent=5 // pred_check
      _
    $region10: #{conv_block_forward.3} parent=5 // pred_check_branch
      %324 = sbr.rel (%p321) target = $region12
    $region11: #{conv_block_forward.3} parent=5 // pred_region
      %s325 = ssub.s32 %s18, 1
      // Predicated region
      $region13: #{conv_block_forward.3} parent=11 // pred_check
        %p326 = pneg %p65
      $region14: #{conv_block_forward.3} parent=11 // pred_check_branch
        %328 = sbr.rel (%p326) target = $region16
      $region15: #{conv_block_forward.3} parent=11 // pred_region
        _
      $region16: #{conv_block_forward.3} parent=11 // pred_fallthru
        _
      // Predicated region
      $region17: #{conv_block_forward.3} parent=11 // pred_check
        %p329 = pneg %p138
      $region18: #{conv_block_forward.3} parent=11 // pred_check_branch
        %331 = sbr.rel (%p329) target = $region20
      $region19: #{conv_block_forward.3} parent=11 // pred_region
        _
      $region20: #{conv_block_forward.3} parent=11 // pred_fallthru
        _
      // Predicated region
      $region21: #{conv_block_forward.3} parent=11 // pred_check
        %p332 = pneg %p159
      $region22: #{conv_block_forward.3} parent=11 // pred_check_branch
        %334 = sbr.rel (%p332) target = $region24
      $region23: #{conv_block_forward.3} parent=11 // pred_region
        _
      $region24: #{conv_block_forward.3} parent=11 // pred_fallthru
        _
      // Predicated region
      $region25: #{conv_block_forward.3} parent=11 // pred_check
        %p335 = pneg %p180
      $region26: #{conv_block_forward.3} parent=11 // pred_check_branch
        %337 = sbr.rel (%p335) target = $region28
      $region27: #{conv_block_forward.3} parent=11 // pred_region
        _
      $region28: #{conv_block_forward.3} parent=11 // pred_fallthru
        _
      // Predicated region
      $region29: #{conv_block_forward.3} parent=11 // pred_check
        %p338 = pneg %p201
      $region30: #{conv_block_forward.3} parent=11 // pred_check_branch
        %340 = sbr.rel (%p338) target = $region32
      $region31: #{conv_block_forward.3} parent=11 // pred_region
        _
      $region32: #{conv_block_forward.3} parent=11 // pred_fallthru
        _
      // Predicated region
      $region33: #{conv_block_forward.3} parent=11 // pred_check
        %p341 = pneg %p222
      $region34: #{conv_block_forward.3} parent=11 // pred_check_branch
        %343 = sbr.rel (%p341) target = $region36
      $region35: #{conv_block_forward.3} parent=11 // pred_region
        _
      $region36: #{conv_block_forward.3} parent=11 // pred_fallthru
        _
      // Predicated region
      $region37: #{conv_block_forward.3} parent=11 // pred_check
        %p344 = pneg %p243
      $region38: #{conv_block_forward.3} parent=11 // pred_check_branch
        %346 = sbr.rel (%p344) target = $region40
      $region39: #{conv_block_forward.3} parent=11 // pred_region
        _
      $region40: #{conv_block_forward.3} parent=11 // pred_fallthru
        _
      // Predicated region
      $region41: #{conv_block_forward.3} parent=11 // pred_check
        %p347 = pneg %p264
      $region42: #{conv_block_forward.3} parent=11 // pred_check_branch
        %349 = sbr.rel (%p347) target = $region44
      $region43: #{conv_block_forward.3} parent=11 // pred_region
        _
      $region44: #{conv_block_forward.3} parent=11 // pred_fallthru
        _
      // Predicated region
      $region45: #{conv_block_forward.3} parent=11 // pred_check
        %p350 = pneg %p285
      $region46: #{conv_block_forward.3} parent=11 // pred_check_branch
        %352 = sbr.rel (%p350) target = $region48
      $region47: #{conv_block_forward.3} parent=11 // pred_region
        _
      $region48: #{conv_block_forward.3} parent=11 // pred_fallthru
        _
    $region12: #{conv_block_forward.3} parent=5 // pred_fallthru
      _
    %p353 = scmp.lt.s32.totalorder %s18, 2
    // Predicated region
    $region49: #{conv_block_forward.3} parent=5 // pred_check
      %p354 = pneg %p353
    $region50: #{conv_block_forward.3} parent=5 // pred_check_branch
      %356 = sbr.rel (%p354) target = $region52
    $region51: #{conv_block_forward.3} parent=5 // pred_region
      // Predicated region
      $region53: #{conv_block_forward.3} parent=51 // pred_check
        %p357 = pneg %p38
      $region54: #{conv_block_forward.3} parent=51 // pred_check_branch
        %359 = sbr.rel (%p357) target = $region56
      $region55: #{conv_block_forward.3} parent=51 // pred_region
        %p360 = scmp.lt.s32.totalorder %s18, 1
        %s361 = scalar_select %p360, %s18, 1
        %s362 = smul.addr %s361, 4
        %s363 = smul.addr %s362, 8
        %s364 = scalar_lea.vmem %s0, %s363
      $region56: #{conv_block_forward.3} parent=51 // pred_fallthru
        _
      // Predicated region
      $region57: #{conv_block_forward.3} parent=51 // pred_check
        %p365 = pneg %p85
      $region58: #{conv_block_forward.3} parent=51 // pred_check_branch
        %367 = sbr.rel (%p365) target = $region60
      $region59: #{conv_block_forward.3} parent=51 // pred_region
        %p368 = scmp.lt.s32.totalorder %s18, 1
        %s369 = scalar_select %p368, %s18, 1
        %s370 = smul.addr %s369, 4
        %s371 = scalar_lea.vmem %s2, %s370
      $region60: #{conv_block_forward.3} parent=51 // pred_fallthru
        _
      // Predicated region
      $region61: #{conv_block_forward.3} parent=51 // pred_check
        %p372 = pneg %p111
      $region62: #{conv_block_forward.3} parent=51 // pred_check_branch
        %374 = sbr.rel (%p372) target = $region64
      $region63: #{conv_block_forward.3} parent=51 // pred_region
        %p375 = scmp.lt.s32.totalorder %s18, 1
        %s376 = scalar_select %p375, %s18, 1
        %s377 = smul.addr %s376, 2
        %s378 = smul.addr %s377, 8
        %s379 = scalar_lea.vmem %s3, %s378
      $region64: #{conv_block_forward.3} parent=51 // pred_fallthru
        _
    $region52: #{conv_block_forward.3} parent=5 // pred_fallthru
      _
    %p380 = scmp.le.s32.totalorder 1, %s18
    %p381 = scmp.lt.s32.totalorder %s18, 3
    %p382 = pnand %p380, %p381
    %p383 = pneg %p382
    // Predicated region
    $region65: #{conv_block_forward.3} parent=5 // pred_check
      _
    $region66: #{conv_block_forward.3} parent=5 // pred_check_branch
      %385 = sbr.rel (%p382) target = $region68
    $region67: #{conv_block_forward.3} parent=5 // pred_region
      %s386 = ssub.s32 %s18, 1
      %p387 = scmp.lt.s32.totalorder %s23, 1
      %s388 = scalar_select %p387, %s23, 1
      %s389 = smul.addr %s388, 4
      %s390 = smul.addr %s389, 8
      %s391 = scalar_lea.vmem %s0, %s390
      %p392 = pneg %p44
      %p393 = pneg %p41
      %p394 = pneg %p65
      %p395 = pneg %p62
      %p396 = scmp.lt.s32.totalorder %s23, 1
      %s397 = scalar_select %p396, %s23, 1
      %s398 = smul.addr %s397, 4
      %s399 = scalar_lea.vmem %s2, %s398
      %p400 = pneg %p91
      %p401 = pneg %p88
      %p402 = scmp.lt.s32.totalorder %s23, 1
      %s403 = scalar_select %p402, %s23, 1
      %s404 = smul.addr %s403, 2
      %s405 = smul.addr %s404, 8
      %s406 = scalar_lea.vmem %s3, %s405
      %p407 = pneg %p117
      %p408 = pneg %p114
      %p409 = pneg %p138
      %p410 = pneg %p135
      %p411 = pneg %p159
      %p412 = pneg %p156
      %p413 = pneg %p180
      %p414 = pneg %p177
      %p415 = pneg %p201
      %p416 = pneg %p198
      %p417 = pneg %p222
      %p418 = pneg %p219
      %p419 = pneg %p243
      %p420 = pneg %p240
      %p421 = pneg %p264
      %p422 = pneg %p261
      %p423 = pneg %p285
      %p424 = pneg %p282
      %p425 = pneg %p311
      %p426 = pneg %p308
      %p427 = scmp.lt.s32.totalorder %s23, 1
      %s428 = scalar_select %p427, %s23, 1
      %s429 = smul.addr %s428, 4
      %s430 = smul.addr %s429, 8
      %s431 = scalar_lea.vmem %s12, %s430
      %p432 = scmp.lt.s32.totalorder %s23, 1
      %s433 = scalar_select %p432, %s23, 1
      %s434 = smul.addr %s433, 4
      %s435 = smul.addr %s434, 8
      %s436 = scalar_lea.vmem %s0, %s435
      %p437 = scmp.lt.s32.totalorder %s23, 1
      %s438 = scalar_select %p437, %s23, 1
      %s439 = smul.addr %s438, 4
      %s440 = scalar_lea.vmem %s2, %s439
      %p441 = scmp.lt.s32.totalorder %s23, 1
      %s442 = scalar_select %p441, %s23, 1
      %s443 = smul.addr %s442, 2
      %s444 = smul.addr %s443, 8
      %s445 = scalar_lea.vmem %s3, %s444
      %p446 = scmp.lt.s32.totalorder %s23, 1
      %s447 = scalar_select %p446, %s23, 1
      %s448 = smul.addr %s447, 4
      %s449 = smul.addr %s448, 8
      %s450 = scalar_lea.vmem %s12, %s449
      %v451 = vld [vmem:[%s436] sm:$0xff]
      %v452 = vld [vmem:[%s436 + $0x8] sm:$0xff]
      %v453 = vld [vmem:[%s436 + $0x10] sm:$0xff]
      %v454 = vld [vmem:[%s436 + $0x18] sm:$0xff]
      %455 = vrot.lane.b32.xlu0 %v451, 17
      %v456 = vpop.permute.xlu0 %455
      %457 = vrot.lane.b32.xlu0 %v453, 17
      %v458 = vpop.permute.xlu0 %457
      %459 = vrot.lane.b32.xlu0 %v452, 17
      %v460 = vpop.permute.xlu0 %459
      %461 = vrot.lane.b32.xlu0 %v454, 17
      %v462 = vpop.permute.xlu0 %461
      %v463 = vlaneseq
      %v464 = vand.u32 %v463, 127
      %vm465 = vcmp.lt.s32.totalorder %v464, 17
      %v466 = vsel %vm465, %v456, %v460
      %v467 = vsel %vm465, %v458, %v462
      %v468 = vsel %vm465, %v460, %v456
      %v469 = vsel %vm465, %v462, %v458
      %v470 = vld [vmem:[%s1] ss:$8 sm:$0x3]
      %v472 = vlaneseq
      %v473 = vshrl.u32 %v472, 7
      %v474 = vsub.s32 0, %v473
      %v475 = vrot.slane %v470, %v474
      %v476 = vlaneseq
      %v477 = vshrl.u32 %v476, 7
      %v478 = vsub.s32 1, %v477
      %v479 = vrot.slane %v470, %v478
      %v482 = vmul.f32 %v468, %v475
      %v483 = vmul.f32 %v466, %v479
      %v484 = vmul.f32 %v469, %v475
      %v485 = vmul.f32 %v467, %v479
      %486 = vrot.lane.b32.xlu0 %v451, 16
      %v487 = vpop.permute.xlu0 %486
      %488 = vrot.lane.b32.xlu0 %v453, 16
      %v489 = vpop.permute.xlu0 %488
      %490 = vrot.lane.b32.xlu0 %v452, 16
      %v491 = vpop.permute.xlu0 %490
      %492 = vrot.lane.b32.xlu0 %v454, 16
      %v493 = vpop.permute.xlu0 %492
      %vm494 = vcmp.lt.s32.totalorder %v464, 16
      %v495 = vsel %vm494, %v487, %v491
      %v496 = vsel %vm494, %v489, %v493
      %v497 = vsel %vm494, %v491, %v487
      %v498 = vsel %vm494, %v493, %v489
      %s499 = scalar_lea.vmem %s1, 1
      %v500 = vld [vmem:[%s499] ss:$8 sm:$0x3]
      %v502 = vlaneseq
      %v503 = vshrl.u32 %v502, 7
      %v504 = vsub.s32 0, %v503
      %v505 = vrot.slane %v500, %v504
      %v506 = vlaneseq
      %v507 = vshrl.u32 %v506, 7
      %v508 = vsub.s32 1, %v507
      %v509 = vrot.slane %v500, %v508
      %v512 = vmul.f32 %v497, %v505
      %v513 = vmul.f32 %v495, %v509
      %v514 = vmul.f32 %v498, %v505
      %v515 = vmul.f32 %v496, %v509
      %516 = vrot.lane.b32.xlu0 %v451, 15
      %v517 = vpop.permute.xlu0 %516
      %518 = vrot.lane.b32.xlu0 %v453, 15
      %v519 = vpop.permute.xlu0 %518
      %520 = vrot.lane.b32.xlu0 %v452, 15
      %v521 = vpop.permute.xlu0 %520
      %522 = vrot.lane.b32.xlu0 %v454, 15
      %v523 = vpop.permute.xlu0 %522
      %vm524 = vcmp.lt.s32.totalorder %v464, 15
      %v525 = vsel %vm524, %v517, %v521
      %v526 = vsel %vm524, %v519, %v523
      %v527 = vsel %vm524, %v521, %v517
      %v528 = vsel %vm524, %v523, %v519
      %s529 = scalar_lea.vmem %s1, 2
      %v530 = vld [vmem:[%s529] ss:$8 sm:$0x3]
      %v532 = vlaneseq
      %v533 = vshrl.u32 %v532, 7
      %v534 = vsub.s32 0, %v533
      %v535 = vrot.slane %v530, %v534
      %v536 = vlaneseq
      %v537 = vshrl.u32 %v536, 7
      %v538 = vsub.s32 1, %v537
      %v539 = vrot.slane %v530, %v538
      %v542 = vmul.f32 %v527, %v535
      %v543 = vmul.f32 %v525, %v539
      %v544 = vmul.f32 %v528, %v535
      %v545 = vmul.f32 %v526, %v539
      %546 = vrot.lane.b32.xlu0 %v451, 1
      %v547 = vpop.permute.xlu0 %546
      %548 = vrot.lane.b32.xlu0 %v453, 1
      %v549 = vpop.permute.xlu0 %548
      %550 = vrot.lane.b32.xlu0 %v452, 1
      %v551 = vpop.permute.xlu0 %550
      %552 = vrot.lane.b32.xlu0 %v454, 1
      %v553 = vpop.permute.xlu0 %552
      %vm554 = vcmp.lt.s32.totalorder %v464, 1
      %v555 = vsel %vm554, %v547, %v551
      %v556 = vsel %vm554, %v549, %v553
      %v557 = vsel %vm554, %v551, %v547
      %v558 = vsel %vm554, %v553, %v549
      %s559 = scalar_lea.vmem %s1, 3
      %v560 = vld [vmem:[%s559] ss:$8 sm:$0x3]
      %v562 = vlaneseq
      %v563 = vshrl.u32 %v562, 7
      %v564 = vsub.s32 0, %v563
      %v565 = vrot.slane %v560, %v564
      %v566 = vlaneseq
      %v567 = vshrl.u32 %v566, 7
      %v568 = vsub.s32 1, %v567
      %v569 = vrot.slane %v560, %v568
      %v572 = vmul.f32 %v557, %v565
      %v573 = vmul.f32 %v555, %v569
      %v574 = vmul.f32 %v558, %v565
      %v575 = vmul.f32 %v556, %v569
      %576 = vrot.lane.b32.xlu0 %v451, 127
      %v577 = vpop.permute.xlu0 %576
      %578 = vrot.lane.b32.xlu0 %v453, 127
      %v579 = vpop.permute.xlu0 %578
      %580 = vrot.lane.b32.xlu0 %v452, 127
      %v581 = vpop.permute.xlu0 %580
      %582 = vrot.lane.b32.xlu0 %v454, 127
      %v583 = vpop.permute.xlu0 %582
      %vm584 = vcmp.lt.s32.totalorder %v464, 127
      %v585 = vsel %vm584, %v577, %v581
      %v586 = vsel %vm584, %v579, %v583
      %v587 = vsel %vm584, %v581, %v577
      %v588 = vsel %vm584, %v583, %v579
      %s589 = scalar_lea.vmem %s1, 5
      %v590 = vld [vmem:[%s589] ss:$8 sm:$0x3]
      %v592 = vlaneseq
      %v593 = vshrl.u32 %v592, 7
      %v594 = vsub.s32 0, %v593
      %v595 = vrot.slane %v590, %v594
      %v596 = vlaneseq
      %v597 = vshrl.u32 %v596, 7
      %v598 = vsub.s32 1, %v597
      %v599 = vrot.slane %v590, %v598
      %v602 = vmul.f32 %v585, %v595
      %v603 = vmul.f32 %v587, %v599
      %v604 = vmul.f32 %v586, %v595
      %v605 = vmul.f32 %v588, %v599
      %606 = vrot.lane.b32.xlu0 %v451, 113
      %v607 = vpop.permute.xlu0 %606
      %608 = vrot.lane.b32.xlu0 %v453, 113
      %v609 = vpop.permute.xlu0 %608
      %610 = vrot.lane.b32.xlu0 %v452, 113
      %v611 = vpop.permute.xlu0 %610
      %612 = vrot.lane.b32.xlu0 %v454, 113
      %v613 = vpop.permute.xlu0 %612
      %vm614 = vcmp.lt.s32.totalorder %v464, 113
      %v615 = vsel %vm614, %v607, %v611
      %v616 = vsel %vm614, %v609, %v613
      %v617 = vsel %vm614, %v611, %v607
      %v618 = vsel %vm614, %v613, %v609
      %s619 = scalar_lea.vmem %s1, 6
      %v620 = vld [vmem:[%s619] ss:$8 sm:$0x3]
      %v622 = vlaneseq
      %v623 = vshrl.u32 %v622, 7
      %v624 = vsub.s32 0, %v623
      %v625 = vrot.slane %v620, %v624
      %v626 = vlaneseq
      %v627 = vshrl.u32 %v626, 7
      %v628 = vsub.s32 1, %v627
      %v629 = vrot.slane %v620, %v628
      %v632 = vmul.f32 %v615, %v625
      %v633 = vmul.f32 %v617, %v629
      %v634 = vmul.f32 %v616, %v625
      %v635 = vmul.f32 %v618, %v629
      %636 = vrot.lane.b32.xlu0 %v451, 112
      %v637 = vpop.permute.xlu0 %636
      %638 = vrot.lane.b32.xlu0 %v453, 112
      %v639 = vpop.permute.xlu0 %638
      %640 = vrot.lane.b32.xlu0 %v452, 112
      %v641 = vpop.permute.xlu0 %640
      %642 = vrot.lane.b32.xlu0 %v454, 112
      %v643 = vpop.permute.xlu0 %642
      %vm644 = vcmp.lt.s32.totalorder %v464, 112
      %v645 = vsel %vm644, %v637, %v641
      %v646 = vsel %vm644, %v639, %v643
      %v647 = vsel %vm644, %v641, %v637
      %v648 = vsel %vm644, %v643, %v639
      %s649 = scalar_lea.vmem %s1, 7
      %v650 = vld [vmem:[%s649] ss:$8 sm:$0x3]
      %v652 = vlaneseq
      %v653 = vshrl.u32 %v652, 7
      %v654 = vsub.s32 0, %v653
      %v655 = vrot.slane %v650, %v654
      %v656 = vlaneseq
      %v657 = vshrl.u32 %v656, 7
      %v658 = vsub.s32 1, %v657
      %v659 = vrot.slane %v650, %v658
      %v662 = vmul.f32 %v645, %v655
      %v663 = vmul.f32 %v647, %v659
      %v664 = vmul.f32 %v646, %v655
      %v665 = vmul.f32 %v648, %v659
      %666 = vrot.lane.b32.xlu0 %v451, 111
      %v667 = vpop.permute.xlu0 %666
      %668 = vrot.lane.b32.xlu0 %v453, 111
      %v669 = vpop.permute.xlu0 %668
      %670 = vrot.lane.b32.xlu0 %v452, 111
      %v671 = vpop.permute.xlu0 %670
      %672 = vrot.lane.b32.xlu0 %v454, 111
      %v673 = vpop.permute.xlu0 %672
      %vm674 = vcmp.lt.s32.totalorder %v464, 111
      %v675 = vsel %vm674, %v667, %v671
      %v676 = vsel %vm674, %v669, %v673
      %v677 = vsel %vm674, %v671, %v667
      %v678 = vsel %vm674, %v673, %v669
      %s679 = scalar_lea.vmem %s1, 16
      %v680 = vld [vmem:[%s679] ss:$8 sm:$0x3]
      %v682 = vlaneseq
      %v683 = vshrl.u32 %v682, 7
      %v684 = vsub.s32 0, %v683
      %v685 = vrot.slane %v680, %v684
      %v686 = vlaneseq
      %v687 = vshrl.u32 %v686, 7
      %v688 = vsub.s32 1, %v687
      %v689 = vrot.slane %v680, %v688
      %v692 = vmul.f32 %v675, %v685
      %v693 = vmul.f32 %v677, %v689
      %v694 = vmul.f32 %v676, %v685
      %v695 = vmul.f32 %v678, %v689
      %v696 = vld [vmem:[%s445] sm:$0xff]
      %v697 = vld [vmem:[%s445 + $0x8] sm:$0xff]
      %v698 = vld [vmem:[%s4] sm:$0xff]
      %v699 = vld [vmem:[%s4 + $0x8] sm:$0xff]
      %v700 = vld [vmem:[%s4 + $0x10] sm:$0xff]
      %v701 = vld [vmem:[%s4 + $0x18] sm:$0xff]
      %vm702 = vcmask 130048
      %v704 = vsel %vm702, %v699, 0
      %v707 = vsel %vm702, %v701, 0
      %709 = vmatprep.subr.mxu0 %v665
      %710 = vmatpush1.msra.mxu0 %v664
      %711 = vmatprep.subr.mxu0 %v663
      %712 = vmatpush1.msra.mxu0 %v662
      %713 = vmatprep.subr.mxu0 %v635
      %714 = vmatpush1.msra.mxu0 %v634
      %715 = vmatprep.subr.mxu0 %v633
      %716 = vmatpush1.msra.mxu0 %v632
      %717 = vmatprep.subr.mxu0 %v605
      %718 = vmatpush1.msra.mxu0 %v604
      %719 = vmatprep.subr.mxu0 %v603
      %720 = vmatpush1.msra.mxu0 %v602
      %721 = vmatprep.subr.mxu0 %v454
      %722 = vmatpush1.msra.mxu0 %v453
      %723 = vmatprep.subr.mxu0 %v452
      %724 = vmatpush1.msra.mxu0 %v451
      %725 = vmatprep.subr.mxu0 %v575
      %726 = vmatpush1.msra.mxu0 %v574
      %727 = vmatprep.subr.mxu0 %v573
      %728 = vmatpush1.msra.mxu0 %v572
      %729 = vmatprep.subr.mxu0 %v545
      %730 = vmatpush1.msra.mxu0 %v544
      %731 = vmatprep.subr.mxu0 %v543
      %732 = vmatpush1.msra.mxu0 %v542
      %733 = vmatprep.subr.mxu0 %v515
      %734 = vmatpush1.msra.mxu0 %v514
      %735 = vmatprep.subr.mxu0 %v513
      %736 = vmatpush1.msra.mxu0 %v512
      %737 = vmatprep.subr.mxu0 %v485
      %738 = vmatpush1.msra.mxu0 %v484
      %739 = vmatprep.subr.mxu0 %v483
      %740 = vmatpush1.msra.mxu0 %v482
      %741 = vmatprep.subr.mxu0 0.0
      %742 = vmatpush2.msra.mxu0 0.0
      %743 = vmatprep.subr.mxu0 0.0
      %744 = vmatpush2.msra.mxu0 0.0
      %745 = vmatprep.subr.mxu0 0.0
      %746 = vmatpush2.msra.mxu0 0.0
      %747 = vmatprep.subr.mxu0 0.0
      %748 = vmatpush2.msra.mxu0 0.0
      %749 = vmatprep.subr.mxu0 0.0
      %750 = vmatpush2.msra.mxu0 0.0
      %751 = vmatprep.subr.mxu0 0.0
      %752 = vmatpush2.msra.mxu0 0.0
      %753 = vmatprep.subr.mxu0 0.0
      %754 = vmatpush2.msra.mxu0 0.0
      %755 = vmatprep.subr.mxu0 0.0
      %756 = vmatpush2.msra.mxu0 0.0
      %757 = vmatprep.subr.mxu0 0.0
      %758 = vmatpush2.msra.mxu0 0.0
      %759 = vmatprep.subr.mxu0 0.0
      %760 = vmatpush2.msra.mxu0 0.0
      %761 = vmatprep.subr.mxu0 0.0
      %762 = vmatpush2.msra.mxu0 0.0
      %763 = vmatprep.subr.mxu0 0.0
      %764 = vmatpush2.msra.mxu0 0.0
      %765 = vmatprep.subr.mxu0 0.0
      %766 = vmatpush2.msra.mxu0 0.0
      %767 = vmatprep.subr.mxu0 0.0
      %768 = vmatpush2.msra.mxu0 0.0
      %769 = vmatprep.subr.mxu0 %v695
      %770 = vmatpush2.msra.mxu0 %v694
      %771 = vmatprep.subr.mxu0 %v693
      %772 = vmatpush2.msra.mxu0 %v692
      %773 = vmatprep.mubr.f32.mxu0 %v704
      %774 = vmatmul.mubr.f32.gmra.mxu0 %v698
      %v775 = vpop.f32.mrf.mxu0
      %v776 = vadd.f32 0.0, %v775
      %v777 = vpop.f32.mrf.mxu0
      %v778 = vadd.f32 0.0, %v777
      %779 = vmatprep.mubr.f32.mxu0 %v707
      %780 = vmatmul.mubr.f32.gmra.mxu0 %v700
      %v781 = vpop.f32.mrf.mxu0
      %v782 = vadd.f32 0.0, %v781
      %v783 = vpop.f32.mrf.mxu0
      %v784 = vadd.f32 0.0, %v783
      %785 = vdwg.mxu0
      %787 = vset.pattern.permute.xlu0 0
      %788 = vperm.xlu0 %787, %v696
      %v789 = vpop.permute.xlu0 %788
      %792 = vset.pattern.permute.xlu0 0
      %793 = vperm.xlu0 %792, %v697
      %v794 = vpop.permute.xlu0 %793
      %v796 = vmul.f32 %v789, %v776
      %v797 = vmul.f32 %v789, %v778
      %v798 = vmul.f32 %v794, %v782
      %v799 = vmul.f32 %v794, %v784
      %v800 = vld [vmem:[%s5] sm:$0xf]
      %v801 = vld [vmem:[%s6] sm:$0xf]
      %803 = vset.pattern.permute.xlu0 0
      %804 = vperm.xlu0 %803, %v801
      %v805 = vpop.permute.xlu0 %804
      %v808 = vsel %vm702, %v800, 0
      %810 = vmatprep.subr.mxu0 0.0
      %811 = vmatpush1.msra.mxu0 0.0
      %812 = vmatprep.subr.mxu0 0.0
      %813 = vmatpush1.msra.mxu0 0.0
      %814 = vmatprep.subr.mxu0 0.0
      %815 = vmatpush1.msra.mxu0 0.0
      %816 = vmatprep.subr.mxu0 0.0
      %817 = vmatpush1.msra.mxu0 0.0
      %818 = vmatprep.subr.mxu0 0.0
      %819 = vmatpush1.msra.mxu0 0.0
      %820 = vmatprep.subr.mxu0 0.0
      %821 = vmatpush1.msra.mxu0 0.0
      %822 = vmatprep.subr.mxu0 0.0
      %823 = vmatpush1.msra.mxu0 0.0
      %824 = vmatprep.subr.mxu0 0.0
      %825 = vmatpush1.msra.mxu0 0.0
      %826 = vmatprep.subr.mxu0 0.0
      %827 = vmatpush1.msra.mxu0 0.0
      %828 = vmatprep.subr.mxu0 0.0
      %829 = vmatpush1.msra.mxu0 0.0
      %830 = vmatprep.subr.mxu0 0.0
      %831 = vmatpush1.msra.mxu0 0.0
      %832 = vmatprep.subr.mxu0 0.0
      %833 = vmatpush1.msra.mxu0 0.0
      %834 = vmatprep.subr.mxu0 0.0
      %835 = vmatpush1.msra.mxu0 0.0
      %836 = vmatprep.subr.mxu0 0.0
      %837 = vmatpush1.msra.mxu0 0.0
      %838 = vmatprep.subr.mxu0 %v454
      %839 = vmatpush1.msra.mxu0 %v453
      %840 = vmatprep.subr.mxu0 %v452
      %841 = vmatpush1.msra.mxu0 %v451
      %842 = vmatprep.subr.mxu0 0.0
      %843 = vmatpush2.msra.mxu0 0.0
      %844 = vmatprep.subr.mxu0 0.0
      %845 = vmatpush2.msra.mxu0 0.0
      %846 = vmatprep.subr.mxu0 0.0
      %847 = vmatpush2.msra.mxu0 0.0
      %848 = vmatprep.subr.mxu0 0.0
      %849 = vmatpush2.msra.mxu0 0.0
      %850 = vmatprep.subr.mxu0 0.0
      %851 = vmatpush2.msra.mxu0 0.0
      %852 = vmatprep.subr.mxu0 0.0
      %853 = vmatpush2.msra.mxu0 0.0
      %854 = vmatprep.subr.mxu0 0.0
      %855 = vmatpush2.msra.mxu0 0.0
      %856 = vmatprep.subr.mxu0 0.0
      %857 = vmatpush2.msra.mxu0 0.0
      %858 = vmatprep.subr.mxu0 0.0
      %859 = vmatpush2.msra.mxu0 0.0
      %860 = vmatprep.subr.mxu0 0.0
      %861 = vmatpush2.msra.mxu0 0.0
      %862 = vmatprep.subr.mxu0 0.0
      %863 = vmatpush2.msra.mxu0 0.0
      %864 = vmatprep.subr.mxu0 0.0
      %865 = vmatpush2.msra.mxu0 0.0
      %866 = vmatprep.subr.mxu0 0.0
      %867 = vmatpush2.msra.mxu0 0.0
      %868 = vmatprep.subr.mxu0 0.0
      %869 = vmatpush2.msra.mxu0 0.0
      %870 = vmatprep.subr.mxu0 0.0
      %871 = vmatpush2.msra.mxu0 0.0
      %872 = vmatprep.subr.mxu0 0.0
      %873 = vmatpush2.msra.mxu0 0.0
      %874 = vmatprep.mubr.f32.mxu0 0.0
      %875 = vmatmul.mubr.f32.gmra.mxu0 %v808
      %v876 = vpop.f32.mrf.mxu0
      %v877 = vadd.f32 %v805, %v876
      %v878 = vpop.f32.mrf.mxu0
      %v879 = vadd.f32 %v805, %v878
      %880 = vdwg.mxu0
      %v881 = vld [vmem:[%s440] sm:$0xf]
      %vm882 = vcmask 31744
      %v884 = vsel %vm882, %v881, 0
      %vm886 = vcmask 1043456
      %v888 = vsel %vm886, %v877, 0
      %v891 = vsel %vm886, %v879, 0
      %893 = vmatprep.subr.mxu0 0.0
      %894 = vmatpush1.msra.mxu0 0.0
      %895 = vmatprep.subr.mxu0 0.0
      %896 = vmatpush1.msra.mxu0 0.0
      %897 = vmatprep.subr.mxu0 0.0
      %898 = vmatpush1.msra.mxu0 0.0
      %899 = vmatprep.subr.mxu0 0.0
      %900 = vmatpush1.msra.mxu0 0.0
      %901 = vmatprep.subr.mxu0 0.0
      %902 = vmatpush1.msra.mxu0 0.0
      %903 = vmatprep.subr.mxu0 0.0
      %904 = vmatpush1.msra.mxu0 0.0
      %905 = vmatprep.subr.mxu0 0.0
      %906 = vmatpush1.msra.mxu0 0.0
      %907 = vmatprep.subr.mxu0 0.0
      %908 = vmatpush1.msra.mxu0 0.0
      %909 = vmatprep.subr.mxu0 0.0
      %910 = vmatpush1.msra.mxu0 0.0
      %911 = vmatprep.subr.mxu0 0.0
      %912 = vmatpush1.msra.mxu0 0.0
      %913 = vmatprep.subr.mxu0 0.0
      %914 = vmatpush1.msra.mxu0 0.0
      %915 = vmatprep.subr.mxu0 0.0
      %916 = vmatpush1.msra.mxu0 0.0
      %917 = vmatprep.subr.mxu0 0.0
      %918 = vmatpush1.msra.mxu0 0.0
      %919 = vmatprep.subr.mxu0 0.0
      %920 = vmatpush1.msra.mxu0 0.0
      %921 = vmatprep.subr.mxu0 0.0
      %922 = vmatpush1.msra.mxu0 0.0
      %923 = vmatprep.subr.mxu0 %v891
      %924 = vmatpush1.msra.mxu0 %v888
      %925 = vmatprep.subr.mxu0 0.0
      %926 = vmatpush2.msra.mxu0 0.0
      %927 = vmatprep.subr.mxu0 0.0
      %928 = vmatpush2.msra.mxu0 0.0
      %929 = vmatprep.subr.mxu0 0.0
      %930 = vmatpush2.msra.mxu0 0.0
      %931 = vmatprep.subr.mxu0 0.0
      %932 = vmatpush2.msra.mxu0 0.0
      %933 = vmatprep.subr.mxu0 0.0
      %934 = vmatpush2.msra.mxu0 0.0
      %935 = vmatprep.subr.mxu0 0.0
      %936 = vmatpush2.msra.mxu0 0.0
      %937 = vmatprep.subr.mxu0 0.0
      %938 = vmatpush2.msra.mxu0 0.0
      %939 = vmatprep.subr.mxu0 0.0
      %940 = vmatpush2.msra.mxu0 0.0
      %941 = vmatprep.subr.mxu0 0.0
      %942 = vmatpush2.msra.mxu0 0.0
      %943 = vmatprep.subr.mxu0 0.0
      %944 = vmatpush2.msra.mxu0 0.0
      %945 = vmatprep.subr.mxu0 0.0
      %946 = vmatpush2.msra.mxu0 0.0
      %947 = vmatprep.subr.mxu0 0.0
      %948 = vmatpush2.msra.mxu0 0.0
      %949 = vmatprep.subr.mxu0 0.0
      %950 = vmatpush2.msra.mxu0 0.0
      %951 = vmatprep.subr.mxu0 0.0
      %952 = vmatpush2.msra.mxu0 0.0
      %953 = vmatprep.subr.mxu0 0.0
      %954 = vmatpush2.msra.mxu0 0.0
      %955 = vmatprep.subr.mxu0 0.0
      %956 = vmatpush2.msra.mxu0 0.0
      %957 = vmatprep.mubr.f32.mxu0 0.0
      %958 = vmatmul.mubr.f32.gmra.mxu0 %v884
      %v959 = vpop.f32.mrf.mxu0
      %v960 = vadd.f32 0.0, %v959
      %v961 = vpop.f32.mrf.mxu0
      %v962 = vadd.f32 0.0, %v961
      %963 = vdwg.mxu0
      %v964 = vld [vmem:[%s7] sm:$0xf]
      %966 = vset.pattern.permute.xlu0 0
      %967 = vperm.xlu0 %966, %v964
      %v968 = vpop.permute.xlu0 %967
      %v970 = vmul.f32 %v968, %v960
      %v971 = vmul.f32 %v968, %v962
      %v972 = vld [vmem:[%s8] sm:$0xf]
      %974 = vset.pattern.permute.xlu0 0
      %975 = vperm.xlu0 %974, %v972
      %v976 = vpop.permute.xlu0 %975
      %v978 = vadd.f32 %v970, %v976
      %v979 = vadd.f32 %v971, %v976
      %v980 = vadd.f32 %v978, %v877
      %v981 = vadd.f32 %v979, %v879
      %v982 = vld [vmem:[%s9] sm:$0xff]
      %v983 = vld [vmem:[%s9 + $0x8] sm:$0xff]
      %v985 = vsel %vm882, %v982, 0
      %v988 = vsel %vm882, %v983, 0
      %v991 = vsel %vm886, %v980, 0
      %v994 = vsel %vm886, %v981, 0
      %996 = vmatprep.subr.mxu0 0.0
      %997 = vmatpush1.msra.mxu0 0.0
      %998 = vmatprep.subr.mxu0 0.0
      %999 = vmatpush1.msra.mxu0 0.0
      %1000 = vmatprep.subr.mxu0 0.0
      %1001 = vmatpush1.msra.mxu0 0.0
      %1002 = vmatprep.subr.mxu0 0.0
      %1003 = vmatpush1.msra.mxu0 0.0
      %1004 = vmatprep.subr.mxu0 0.0
      %1005 = vmatpush1.msra.mxu0 0.0
      %1006 = vmatprep.subr.mxu0 0.0
      %1007 = vmatpush1.msra.mxu0 0.0
      %1008 = vmatprep.subr.mxu0 0.0
      %1009 = vmatpush1.msra.mxu0 0.0
      %1010 = vmatprep.subr.mxu0 0.0
      %1011 = vmatpush1.msra.mxu0 0.0
      %1012 = vmatprep.subr.mxu0 0.0
      %1013 = vmatpush1.msra.mxu0 0.0
      %1014 = vmatprep.subr.mxu0 0.0
      %1015 = vmatpush1.msra.mxu0 0.0
      %1016 = vmatprep.subr.mxu0 0.0
      %1017 = vmatpush1.msra.mxu0 0.0
      %1018 = vmatprep.subr.mxu0 0.0
      %1019 = vmatpush1.msra.mxu0 0.0
      %1020 = vmatprep.subr.mxu0 0.0
      %1021 = vmatpush1.msra.mxu0 0.0
      %1022 = vmatprep.subr.mxu0 0.0
      %1023 = vmatpush1.msra.mxu0 0.0
      %1024 = vmatprep.subr.mxu0 0.0
      %1025 = vmatpush1.msra.mxu0 0.0
      %1026 = vmatprep.subr.mxu0 %v994
      %1027 = vmatpush1.msra.mxu0 %v991
      %1028 = vmatprep.subr.mxu0 0.0
      %1029 = vmatpush2.msra.mxu0 0.0
      %1030 = vmatprep.subr.mxu0 0.0
      %1031 = vmatpush2.msra.mxu0 0.0
      %1032 = vmatprep.subr.mxu0 0.0
      %1033 = vmatpush2.msra.mxu0 0.0
      %1034 = vmatprep.subr.mxu0 0.0
      %1035 = vmatpush2.msra.mxu0 0.0
      %1036 = vmatprep.subr.mxu0 0.0
      %1037 = vmatpush2.msra.mxu0 0.0
      %1038 = vmatprep.subr.mxu0 0.0
      %1039 = vmatpush2.msra.mxu0 0.0
      %1040 = vmatprep.subr.mxu0 0.0
      %1041 = vmatpush2.msra.mxu0 0.0
      %1042 = vmatprep.subr.mxu0 0.0
      %1043 = vmatpush2.msra.mxu0 0.0
      %1044 = vmatprep.subr.mxu0 0.0
      %1045 = vmatpush2.msra.mxu0 0.0
      %1046 = vmatprep.subr.mxu0 0.0
      %1047 = vmatpush2.msra.mxu0 0.0
      %1048 = vmatprep.subr.mxu0 0.0
      %1049 = vmatpush2.msra.mxu0 0.0
      %1050 = vmatprep.subr.mxu0 0.0
      %1051 = vmatpush2.msra.mxu0 0.0
      %1052 = vmatprep.subr.mxu0 0.0
      %1053 = vmatpush2.msra.mxu0 0.0
      %1054 = vmatprep.subr.mxu0 0.0
      %1055 = vmatpush2.msra.mxu0 0.0
      %1056 = vmatprep.subr.mxu0 0.0
      %1057 = vmatpush2.msra.mxu0 0.0
      %1058 = vmatprep.subr.mxu0 0.0
      %1059 = vmatpush2.msra.mxu0 0.0
      %1060 = vmatprep.mubr.f32.mxu0 0.0
      %1061 = vmatmul.mubr.f32.gmra.mxu0 %v985
      %v1062 = vpop.f32.mrf.mxu0
      %v1063 = vadd.f32 %v796, %v1062
      %v1064 = vpop.f32.mrf.mxu0
      %v1065 = vadd.f32 %v797, %v1064
      %1066 = vmatprep.mubr.f32.mxu0 0.0
      %1067 = vmatmul.mubr.f32.gmra.mxu0 %v988
      %v1068 = vpop.f32.mrf.mxu0
      %v1069 = vadd.f32 %v798, %v1068
      %v1070 = vpop.f32.mrf.mxu0
      %v1071 = vadd.f32 %v799, %v1070
      %1072 = vdwg.mxu0
      %v1073 = vld [vmem:[%s10] sm:$0xff]
      %v1074 = vld [vmem:[%s10 + $0x8] sm:$0xff]
      %1076 = vset.pattern.permute.xlu0 0
      %1077 = vperm.xlu0 %1076, %v1073
      %v1078 = vpop.permute.xlu0 %1077
      %1081 = vset.pattern.permute.xlu0 0
      %1082 = vperm.xlu0 %1081, %v1074
      %v1083 = vpop.permute.xlu0 %1082
      %v1085 = vmul.f32 %v1078, %v1063
      %v1086 = vmul.f32 %v1078, %v1065
      %v1087 = vmul.f32 %v1083, %v1069
      %v1088 = vmul.f32 %v1083, %v1071
      %v1089 = vld [vmem:[%s11] sm:$0xff]
      %v1090 = vld [vmem:[%s11 + $0x8] sm:$0xff]
      %1092 = vset.pattern.permute.xlu0 0
      %1093 = vperm.xlu0 %1092, %v1089
      %v1094 = vpop.permute.xlu0 %1093
      %1097 = vset.pattern.permute.xlu0 0
      %1098 = vperm.xlu0 %1097, %v1090
      %v1099 = vpop.permute.xlu0 %1098
      %v1101 = vadd.f32 %v1085, %v1094
      %v1102 = vadd.f32 %v1086, %v1094
      %v1103 = vadd.f32 %v1087, %v1099
      %v1104 = vadd.f32 %v1088, %v1099
      %v1105 = vmax.f32 %v1101, 0.0
      %v1106 = vmax.f32 %v1102, 0.0
      %v1107 = vmax.f32 %v1103, 0.0
      %v1108 = vmax.f32 %v1104, 0.0
      %1109 = vst [vmem:[%s450] sm:$0xff] %v1105
      %1110 = vst [vmem:[%s450 + $0x8] sm:$0xff] %v1106
      %1111 = vst [vmem:[%s450 + $0x10] sm:$0xff] %v1107
      %1112 = vst [vmem:[%s450 + $0x18] sm:$0xff] %v1108
      %p1113 = scmp.lt.s32.totalorder %s23, 1
      %s1114 = scalar_select %p1113, %s23, 1
      %s1115 = smul.addr %s1114, 4
      %s1116 = smul.addr %s1115, 8
      %s1117 = scalar_lea.vmem %s12, %s1116
      // Predicated region
      $region69: #{conv_block_forward.3} parent=67 // pred_check
        %p1118 = pneg %p308
      $region70: #{conv_block_forward.3} parent=67 // pred_check_branch
        %1120 = sbr.rel (%p1118) target = $region72
      $region71: #{conv_block_forward.3} parent=67 // pred_region
        _
      $region72: #{conv_block_forward.3} parent=67 // pred_fallthru
        _
    $region68: #{conv_block_forward.3} parent=5 // pred_fallthru
      _
    %p1121 = scmp.le.s32.totalorder 2, %s18
    // Predicated region
    $region73: #{conv_block_forward.3} parent=5 // pred_check
      %p1122 = pneg %p1121
    $region74: #{conv_block_forward.3} parent=5 // pred_check_branch
      %1124 = sbr.rel (%p1122) target = $region76
    $region75: #{conv_block_forward.3} parent=5 // pred_region
      %s1125 = ssub.s32 %s18, 2
      // Predicated region
      $region77: #{conv_block_forward.3} parent=75 // pred_check
        %p1126 = pneg %p314
      $region78: #{conv_block_forward.3} parent=75 // pred_check_branch
        %1128 = sbr.rel (%p1126) target = $region80
      $region79: #{conv_block_forward.3} parent=75 // pred_region
        %p1129 = scmp.lt.s32.totalorder %s24, 1
        %s1130 = scalar_select %p1129, %s24, 1
        %s1131 = smul.addr %s1130, 4
        %s1132 = smul.addr %s1131, 8
        %s1133 = scalar_lea.vmem %s12, %s1132
      $region80: #{conv_block_forward.3} parent=75 // pred_fallthru
        _
    $region76: #{conv_block_forward.3} parent=5 // pred_fallthru
      _
  $region6: #{conv_block_forward.3} parent=0 // loop_footer
    %s22 = sadd.s32 1, %s18
  $region7: #{conv_block_forward.3} parent=0 // loop_footer_branch
    %17 = sbr.rel target = $region3
  $region8: #{conv_block_forward.3} parent=0 // loop_exit
    _

</llo_original>
